<compile_context>
chip_gen: v7x
topology: tpu7x:2x2x1
jax: 0.10.0
libtpu: 0.0.40
codegen_flags: <defaults>
</compile_context>

<pallas_src>
import jax
import jax.numpy as jnp
from jax.experimental import pallas as pl
from jax.experimental.pallas import tpu as pltpu

LANE_WIDTHS = (2048, 1024, 512, 256, 128)   # multiples of 128 -> unmasked vst
SMALL_FAST_PATH_BYTES = 256 * 1024          # below this, plain XLA wins
SUBLANE = {4: 8, 2: 16, 1: 32}              # dtype-native sublane tiling


def _round_up(n, m):
    return ((n + m - 1) // m) * m


def _target_block_bytes():
    """~2 MiB blocks by default; ~4 MiB on v7x (64 MiB VMEM part, 3.2 TB/s HBM
    makes per-step overhead relatively more expensive)."""
    try:
        info = pltpu.get_tpu_info()
        if info.vmem_capacity_bytes <= (64 << 20):   # v7x TensorCore
            return 4 << 20
    except Exception:
        pass
    return 2 << 20


def _make_residual_kernel(fn, compute_dtype):
    """Kernel body: out = fn(x) + x, fused on one VMEM tile (fn elementwise)."""

    def kernel(x_ref, o_ref):
        x = x_ref[...]
        if compute_dtype is not None:
            x = x.astype(compute_dtype)   # optional (e.g. f32 math on v5e)
        o_ref[...] = (fn(x) + x).astype(o_ref.dtype)

    return kernel


def residual(fn, x, *, compute_dtype=None, in_place=False):
    """Pallas-backed Residual(fn)(x) for elementwise fn, arbitrary shape/dtype.

    in_place=True aliases the output onto the input HBM buffer
    (input_output_aliases); only meaningful inside jit where x is a dead
    intermediate, and only honored when no pad copy was required.
    """
    orig_shape = x.shape
    dtype = x.dtype
    total = int(x.size)
    itemsize = jnp.dtype(dtype).itemsize
    sub = SUBLANE.get(itemsize)

    # Never silently downcast the compute precision below the input dtype.
    if compute_dtype is not None and jnp.dtype(compute_dtype).itemsize < itemsize:
        compute_dtype = None

    # Small-tensor / unsupported-dtype fast path: XLA's fused elementwise is
    # strictly faster than the flatten + pallas_call launch overhead.
    if sub is None or total * itemsize < SMALL_FAST_PATH_BYTES:
        xc = x.astype(compute_dtype) if compute_dtype is not None else x
        return (fn(xc) + xc).astype(dtype)

    # Widest lane-dense last dim that divides the element count -> reshape is
    # free, no pad pass and no output-slice pass (ideal 1 read + 1 write).
    lane_width = None
    for lw in LANE_WIDTHS:
        if total % lw == 0:
            lane_width = lw
            break

    needs_pad = lane_width is None
    if needs_pad:
        # TODO(synk): ragged tails could be handled fully in-kernel (masked
        # store on the final block) to avoid this extra HBM pad/slice pass.
        lane_width = 128

    rows = pl.cdiv(total, lane_width)
    padded_total = rows * lane_width

    # Largest sublane-aligned block under the per-generation VMEM budget.
    target_block_bytes = _target_block_bytes()
    block_rows = max(sub, (target_block_bytes // (lane_width * itemsize)) // sub * sub)
    # Keep >= 2 grid steps for medium tensors so dimension_semantics=("parallel",)
    # can shard across both v7x TensorCores (harmless extra step on v5e/v6e).
    if rows >= 2 * sub:
        block_rows = min(block_rows, _round_up(pl.cdiv(rows, 2), sub))
    block_rows = min(block_rows, _round_up(rows, sub))

    flat = x.reshape(-1)
    if needs_pad:
        flat = jnp.pad(flat, (0, padded_total - total))
    x2 = flat.reshape(rows, lane_width)

    grid = (pl.cdiv(rows, block_rows),)

    out2 = pl.pallas_call(
        _make_residual_kernel(fn, compute_dtype),
        out_shape=jax.ShapeDtypeStruct((rows, lane_width), dtype),
        grid_spec=pl.GridSpec(
            grid=grid,
            in_specs=[pl.BlockSpec((block_rows, lane_width), lambda i: (i, 0))],
            out_specs=pl.BlockSpec((block_rows, lane_width), lambda i: (i, 0)),
        ),
        compiler_params=pltpu.CompilerParams(
            dimension_semantics=("parallel",),
            # 4 MiB blocks x 2 bufs x (in+out) = 16 MiB worst case; give the
            # compiler explicit headroom (under every generation's physical VMEM).
            vmem_limit_bytes=32 << 20,
        ),
        cost_estimate=pl.CostEstimate(
            flops=2 * padded_total,
            transcendentals=padded_total,
            bytes_accessed=2 * padded_total * itemsize,
        ),
        # Alias only when x2 really is the caller's buffer (no pad copy made).
        input_output_aliases=({0: 0} if (in_place and not needs_pad) else {}),
    )(x2)

    out_flat = out2.reshape(-1)
    if needs_pad:
        out_flat = out_flat[:total]
    return out_flat.reshape(orig_shape)


if __name__ == "__main__":
    # Example wrapped fn (deterministic, parameter-free, elementwise).
    fn = jax.nn.gelu

    key = jax.random.PRNGKey(0)
    k1, k2, k3 = jax.random.split(key, 3)

    # 1) Small NCHW input matching the module's typical use (fast path).
    x_small = jax.random.normal(key, (2, 4, 16, 16), dtype=jnp.float32)
    out_small = jax.block_until_ready(residual(fn, x_small))
    ref_small = fn(x_small) + x_small
    assert out_small.shape == x_small.shape and out_small.dtype == x_small.dtype
    assert jnp.allclose(out_small, ref_small, atol=1e-5, rtol=1e-5)

    # 2) Larger input exercising the Pallas streaming kernel
    #    (lane-width-divisible, multi-step parallel grid, no pad).
    x_big = jax.random.normal(k1, (4, 16, 64, 64), dtype=jnp.float32)
    out_big = jax.block_until_ready(residual(fn, x_big))
    ref_big = fn(x_big) + x_big
    assert out_big.shape == x_big.shape and out_big.dtype == x_big.dtype
    assert jnp.allclose(out_big, ref_big, atol=1e-5, rtol=1e-5)

    # 3) bf16 input: dtype-native (16,128) tiling, no forced f32 upcast.
    x_bf16 = jax.random.normal(k2, (2, 32, 64, 64), dtype=jnp.bfloat16)
    out_bf16 = jax.block_until_ready(residual(fn, x_bf16))
    ref_bf16 = fn(x_bf16) + x_bf16
    assert out_bf16.dtype == jnp.bfloat16
    assert jnp.allclose(out_bf16.astype(jnp.float32), ref_bf16.astype(jnp.float32),
                        atol=1e-2, rtol=1e-2)

    # 4) Element count not divisible by 128: exercises the minimal-pad fallback.
    x_rag = jax.random.normal(k3, (1155, 257), dtype=jnp.float32)
    out_rag = jax.block_until_ready(residual(fn, x_rag))
    ref_rag = fn(x_rag) + x_rag
    assert out_rag.shape == x_rag.shape
    assert jnp.allclose(out_rag, ref_rag, atol=1e-5, rtol=1e-5)

    print("KERNEL_OK")
</pallas_src>

<mosaic_0001>
module attributes {stable_mosaic.version = 11 : i64} {
  func.func @kernel(%arg0: i32, %arg1: memref<64x2048xf32, #tpu.memory_space<vmem>>, %arg2: memref<64x2048xf32, #tpu.memory_space<vmem>>) attributes {dimension_semantics = [#tpu.dimension_semantics<parallel>], iteration_bounds = array<i64: 2>, scalar_prefetch = 0 : i64, scratch_operands = 0 : i64, tpu.core_type = #tpu.core_type<tc>, window_params = [{transform_indices = @transform_0, window_bounds = array<i64: 64, 2048>}, {transform_indices = @transform_1, window_bounds = array<i64: 64, 2048>}]} {
    %c0 = arith.constant 0 : index
    %c0_0 = arith.constant 0 : index
    %0 = vector.load %arg1[%c0, %c0_0] : memref<64x2048xf32, #tpu.memory_space<vmem>>, vector<64x2048xf32>
    %1 = arith.mulf %0, %0 : vector<64x2048xf32>
    %2 = arith.mulf %0, %1 : vector<64x2048xf32>
    %cst = arith.constant 4.471500e-02 : f32
    %3 = vector.broadcast %cst : f32 to vector<64x2048xf32>
    %4 = arith.mulf %3, %2 : vector<64x2048xf32>
    %5 = arith.addf %0, %4 : vector<64x2048xf32>
    %cst_1 = arith.constant 0.797884583 : f32
    %6 = vector.broadcast %cst_1 : f32 to vector<64x2048xf32>
    %7 = arith.mulf %6, %5 : vector<64x2048xf32>
    %8 = math.tanh %7 : vector<64x2048xf32>
    %cst_2 = arith.constant 1.000000e+00 : f32
    %9 = vector.broadcast %cst_2 : f32 to vector<64x2048xf32>
    %10 = arith.addf %9, %8 : vector<64x2048xf32>
    %cst_3 = arith.constant 5.000000e-01 : f32
    %11 = vector.broadcast %cst_3 : f32 to vector<64x2048xf32>
    %12 = arith.mulf %11, %10 : vector<64x2048xf32>
    %13 = arith.mulf %0, %12 : vector<64x2048xf32>
    %14 = arith.addf %13, %0 : vector<64x2048xf32>
    %c0_4 = arith.constant 0 : index
    %c0_5 = arith.constant 0 : index
    %15 = vector.load %arg2[%c0_4, %c0_5] : memref<64x2048xf32, #tpu.memory_space<vmem>>, vector<64x2048xf32>
    tpu.vector_store %arg2[%c0_4, %c0_5], %14 {strides = array<i32>} : memref<64x2048xf32, #tpu.memory_space<vmem>>, vector<64x2048xf32>,
    return
  }
  func.func @transform_0(%arg0: i32) -> (i32, i32) {
    %c0_i32 = arith.constant 0 : i32
    %c0_i32_0 = arith.constant 0 : i32
    return %arg0, %c0_i32 : i32, i32
  }
  func.func @transform_1(%arg0: i32) -> (i32, i32) {
    %c0_i32 = arith.constant 0 : i32
    %c0_i32_0 = arith.constant 0 : i32
    return %arg0, %c0_i32 : i32, i32
  }
}

</mosaic_0001>

<llo_original>
// kernel: tpu_custom_call.1
$region0: #{tpu_custom_call.1}
  #allocation0 [shape = 'u32[]', space=smem, size = 0x4, offset = 0x4, fixed_abs, tag = 'smem constant byte address 0x4 - core index']
  #allocation1 [shape = 'u32[144,128]{1,0:T(1,128)}', space=vmem, size = 0x12000, scoped, tag = 'internal scratch']
  %s0 = inlined_call_operand.hbm [shape: f32[128,2048], index: 0, kind: input, shape index: {}]
  %s1 = inlined_call_operand.hbm [shape: f32[128,2048], index: 1, kind: output, shape index: {}]
  %s2 = sld [smem:[#allocation0]]
  $region41: #{tpu_custom_call.1} parent=0
    _
  %s4 = ssub.s32 1, %s2
  %s5 = scalar_select 0, %s4, %s2
  $region1: #{tpu_custom_call.1} parent=0
    #allocation2 [shape = 'u8[1048576]{0}', space=vmem, size = 0x100000, scoped, tag = 'input window, operand 0']
    #allocation3 [shape = 's32[2]{0}', space=sflag, size = 0x8, scoped, tag = 'scoped memory for tpu_custom_call.1']
    #allocation4 [shape = 's32[2]{0}', space=sflag, size = 0x8, scoped, tag = 'scoped memory for tpu_custom_call.1']
    #allocation5 [shape = 'u8[1048576]{0}', space=vmem, size = 0x100000, scoped, tag = 'output window, operand 0']
    %6 = vsyncpa [#allocation3], 0
    %s7 = scalar_lea.sflag [#allocation3], 1
    %8 = vsyncpa %s7, 0
    %9 = vsyncpa [#allocation4], 0
    %s10 = scalar_lea.sflag [#allocation4], 1
    %11 = vsyncpa %s10, 0
    loop: start=0, step=1, limit=4
    $region2: #{tpu_custom_call.1} parent=1 // loop_pre_header
      _
    $region3: #{tpu_custom_call.1} parent=1 // loop_header
      %s13 = sphi 0, %s17
      %p14 = scmp.ge.s32.totalorder %s13, 4
      %s23 = sphi 0, %s25
      %s26 = sphi 0, %s23
      %s27 = sphi 0, %s26
      %s43 = sphi 0, %s27
      %s49 = sphi 0, %s51
      %s52 = sphi 0, %s49
      %s53 = sphi 0, %s52
      %s69 = sphi 0, %s53
    $region4: #{tpu_custom_call.1} parent=1 // loop_header_branch
      %16 = sbr.rel (%p14) target = $region8
    $region5: #{tpu_custom_call.1} parent=1 // loop_body
      %s18 = ssub.s32 %s13, 1
      %s19 = ssub.s32 %s13, 2
      %s20 = sadd.s32 %s13, 1
      %s21 = ssub.s32 %s13, %s20
      %p22 = scmp.eq.s32.totalorder %s21, 0
      %s24 = sadd.s32 %s23, 1
      %s25 = scalar_select %p22, %s23, %s24
      %p28 = pneg %p22
      %p29 = scmp.eq.s32.totalorder %s13, 1
      %p30 = por %p28, %p29
      %p31 = scmp.ne.s32.totalorder %s23, %s26
      %p32 = scmp.eq.s32.totalorder %s13, 0
      %p33 = por %p31, %p32
      %p34 = scmp.ne.s32.totalorder %s23, %s26
      %p35 = scmp.eq.s32.totalorder %s18, 1
      %p36 = por %p34, %p35
      %p37 = scmp.ne.s32.totalorder %s26, %s27
      %p38 = scmp.eq.s32.totalorder %s18, 0
      %p39 = por %p37, %p38
      %p40 = scmp.ne.s32.totalorder %s26, %s27
      %p41 = scmp.eq.s32.totalorder %s19, 1
      %p42 = por %p40, %p41
      %p44 = scmp.ne.s32.totalorder %s27, %s43
      %p45 = scmp.eq.s32.totalorder %s19, 0
      %p46 = por %p44, %p45
      %s47 = ssub.s32 %s13, %s20
      %p48 = scmp.eq.s32.totalorder %s47, 0
      %s50 = sadd.s32 %s49, 1
      %s51 = scalar_select %p48, %s49, %s50
      %p54 = pneg %p48
      %p55 = scmp.eq.s32.totalorder %s13, 1
      %p56 = por %p54, %p55
      %p57 = scmp.ne.s32.totalorder %s49, %s52
      %p58 = scmp.eq.s32.totalorder %s13, 0
      %p59 = por %p57, %p58
      %p60 = scmp.ne.s32.totalorder %s49, %s52
      %p61 = scmp.eq.s32.totalorder %s18, 1
      %p62 = por %p60, %p61
      %p63 = scmp.ne.s32.totalorder %s52, %s53
      %p64 = scmp.eq.s32.totalorder %s18, 0
      %p65 = por %p63, %p64
      %p66 = scmp.ne.s32.totalorder %s52, %s53
      %p67 = scmp.eq.s32.totalorder %s19, 1
      %p68 = por %p66, %p67
      %p70 = scmp.ne.s32.totalorder %s53, %s69
      %p71 = scmp.eq.s32.totalorder %s19, 0
      %p72 = por %p70, %p71
      %p73 = scmp.le.s32.totalorder 1, %s13
      %p74 = scmp.lt.s32.totalorder %s13, 3
      %p75 = pnand %p73, %p74
      %p76 = pneg %p75
      // Predicated region
      $region9: #{tpu_custom_call.1} parent=5 // pred_check
        _
      $region10: #{tpu_custom_call.1} parent=5 // pred_check_branch
        %78 = sbr.rel (%p75) target = $region12
      $region11: #{tpu_custom_call.1} parent=5 // pred_region
        %s79 = ssub.s32 %s13, 1
      $region12: #{tpu_custom_call.1} parent=5 // pred_fallthru
        _
      %p80 = scmp.lt.s32.totalorder %s13, 2
      // Predicated region
      $region13: #{tpu_custom_call.1} parent=5 // pred_check
        %p81 = pneg %p80
      $region14: #{tpu_custom_call.1} parent=5 // pred_check_branch
        %83 = sbr.rel (%p81) target = $region16
      $region15: #{tpu_custom_call.1} parent=5 // pred_region
        // Predicated region
        $region17: #{tpu_custom_call.1} parent=15 // pred_check
          %p84 = pneg %p33
        $region18: #{tpu_custom_call.1} parent=15 // pred_check_branch
          %86 = sbr.rel (%p84) target = $region20
        $region19: #{tpu_custom_call.1} parent=15 // pred_region
          %s87 = sand.u32 %s23, 1
          %s88 = scalar_lea.sflag [#allocation3], %s87
          %s89 = sand.u32 %s23, 1
          %s90 = smul.addr %s89, 1024
          %s91 = scalar_lea.vmem [#allocation2], %s90
          %s92 = smul.u32 8, %s13
          %s94 = ssub.s32 16384, 16384
          %95 = vsyncadd %s88, %s94
          %s96 = smul.addr %s92, 16
          %s97 = smul.addr %s96, 128
          %s98 = scalar_lea.hbm %s0, %s97
          %s99 = sshll.u32 %s91, 4
          %s100 = int_to_ptr.vmem [resolvable:$true] %s99
          %105 = dma.hbm_to_vmem [thread:$0]  %s98, 16384, %s100, %s88, 2048, 2048, 128
        $region20: #{tpu_custom_call.1} parent=15 // pred_fallthru
          _
      $region16: #{tpu_custom_call.1} parent=5 // pred_fallthru
        _
      %p106 = scmp.le.s32.totalorder 1, %s13
      %p107 = scmp.lt.s32.totalorder %s13, 3
      %p108 = pnand %p106, %p107
      %p109 = pneg %p108
      // Predicated region
      $region21: #{tpu_custom_call.1} parent=5 // pred_check
        _
      $region22: #{tpu_custom_call.1} parent=5 // pred_check_branch
        %111 = sbr.rel (%p108) target = $region24
      $region23: #{tpu_custom_call.1} parent=5 // pred_region
        %s112 = ssub.s32 %s13, 1
        %s113 = sand.u32 %s26, 1
        %s114 = scalar_lea.sflag [#allocation3], %s113
        %s115 = sand.u32 %s26, 1
        %s116 = smul.addr %s115, 1024
        %s117 = scalar_lea.vmem [#allocation2], %s116
        // Predicated region
        $region25: #{tpu_custom_call.1} parent=23 // pred_check
          %p118 = pneg %p39
        $region26: #{tpu_custom_call.1} parent=23 // pred_check_branch
          %120 = sbr.rel (%p118) target = $region28
        $region27: #{tpu_custom_call.1} parent=23 // pred_region
          %121 = dma.done %s114, 16384
        $region28: #{tpu_custom_call.1} parent=23 // pred_fallthru
          _
        %s122 = sand.u32 %s26, 1
        %s123 = scalar_lea.sflag [#allocation3], %s122
        %s124 = sand.u32 %s26, 1
        %s125 = smul.addr %s124, 1024
        %s126 = scalar_lea.vmem [#allocation2], %s125
        %p127 = pneg %p39
        %p128 = pneg %p36
        %p129 = pneg %p65
        %p130 = pneg %p62
        %s131 = sand.u32 %s52, 1
        %s132 = scalar_lea.sflag [#allocation4], %s131
        %s133 = sand.u32 %s52, 1
        %s134 = smul.addr %s133, 1024
        %s135 = scalar_lea.vmem [#allocation5], %s134
        %s136 = smul.u32 8, %s18
        %s137 = smul.u32 8, %s18
        %v138 = vld [vmem:[%s117] sm:$0xff]
        %v139 = vld [vmem:[%s117 + $0x8] sm:$0xff]
        %v140 = vld [vmem:[%s117 + $0x10] sm:$0xff]
        %v141 = vld [vmem:[%s117 + $0x18] sm:$0xff]
        %v142 = vld [vmem:[%s117 + $0x20] sm:$0xff]
        %v143 = vld [vmem:[%s117 + $0x28] sm:$0xff]
        %v144 = vld [vmem:[%s117 + $0x30] sm:$0xff]
        %v145 = vld [vmem:[%s117 + $0x38] sm:$0xff]
        %v146 = vld [vmem:[%s117 + $0x40] sm:$0xff]
        %v147 = vld [vmem:[%s117 + $0x48] sm:$0xff]
        %v148 = vld [vmem:[%s117 + $0x50] sm:$0xff]
        %v149 = vld [vmem:[%s117 + $0x58] sm:$0xff]
        %v150 = vld [vmem:[%s117 + $0x60] sm:$0xff]
        %v151 = vld [vmem:[%s117 + $0x68] sm:$0xff]
        %v152 = vld [vmem:[%s117 + $0x70] sm:$0xff]
        %v153 = vld [vmem:[%s117 + $0x78] sm:$0xff]
        %v154 = vld [vmem:[%s117 + $0x80] sm:$0xff]
        %v155 = vld [vmem:[%s117 + $0x88] sm:$0xff]
        %v156 = vld [vmem:[%s117 + $0x90] sm:$0xff]
        %v157 = vld [vmem:[%s117 + $0x98] sm:$0xff]
        %v158 = vld [vmem:[%s117 + $0xa0] sm:$0xff]
        %v159 = vld [vmem:[%s117 + $0xa8] sm:$0xff]
        %v160 = vld [vmem:[%s117 + $0xb0] sm:$0xff]
        %v161 = vld [vmem:[%s117 + $0xb8] sm:$0xff]
        %v162 = vld [vmem:[%s117 + $0xc0] sm:$0xff]
        %v163 = vld [vmem:[%s117 + $0xc8] sm:$0xff]
        %v164 = vld [vmem:[%s117 + $0xd0] sm:$0xff]
        %v165 = vld [vmem:[%s117 + $0xd8] sm:$0xff]
        %v166 = vld [vmem:[%s117 + $0xe0] sm:$0xff]
        %v167 = vld [vmem:[%s117 + $0xe8] sm:$0xff]
        %v168 = vld [vmem:[%s117 + $0xf0] sm:$0xff]
        %v169 = vld [vmem:[%s117 + $0xf8] sm:$0xff]
        %v170 = vld [vmem:[%s117 + $0x100] sm:$0xff]
        %v171 = vld [vmem:[%s117 + $0x108] sm:$0xff]
        %v172 = vld [vmem:[%s117 + $0x110] sm:$0xff]
        %v173 = vld [vmem:[%s117 + $0x118] sm:$0xff]
        %v174 = vld [vmem:[%s117 + $0x120] sm:$0xff]
        %v175 = vld [vmem:[%s117 + $0x128] sm:$0xff]
        %v176 = vld [vmem:[%s117 + $0x130] sm:$0xff]
        %v177 = vld [vmem:[%s117 + $0x138] sm:$0xff]
        %v178 = vld [vmem:[%s117 + $0x140] sm:$0xff]
        %v179 = vld [vmem:[%s117 + $0x148] sm:$0xff]
        %v180 = vld [vmem:[%s117 + $0x150] sm:$0xff]
        %v181 = vld [vmem:[%s117 + $0x158] sm:$0xff]
        %v182 = vld [vmem:[%s117 + $0x160] sm:$0xff]
        %v183 = vld [vmem:[%s117 + $0x168] sm:$0xff]
        %v184 = vld [vmem:[%s117 + $0x170] sm:$0xff]
        %v185 = vld [vmem:[%s117 + $0x178] sm:$0xff]
        %v186 = vld [vmem:[%s117 + $0x180] sm:$0xff]
        %v187 = vld [vmem:[%s117 + $0x188] sm:$0xff]
        %v188 = vld [vmem:[%s117 + $0x190] sm:$0xff]
        %v189 = vld [vmem:[%s117 + $0x198] sm:$0xff]
        %v190 = vld [vmem:[%s117 + $0x1a0] sm:$0xff]
        %v191 = vld [vmem:[%s117 + $0x1a8] sm:$0xff]
        %v192 = vld [vmem:[%s117 + $0x1b0] sm:$0xff]
        %v193 = vld [vmem:[%s117 + $0x1b8] sm:$0xff]
        %v194 = vld [vmem:[%s117 + $0x1c0] sm:$0xff]
        %v195 = vld [vmem:[%s117 + $0x1c8] sm:$0xff]
        %v196 = vld [vmem:[%s117 + $0x1d0] sm:$0xff]
        %v197 = vld [vmem:[%s117 + $0x1d8] sm:$0xff]
        %v198 = vld [vmem:[%s117 + $0x1e0] sm:$0xff]
        %v199 = vld [vmem:[%s117 + $0x1e8] sm:$0xff]
        %v200 = vld [vmem:[%s117 + $0x1f0] sm:$0xff]
        %v201 = vld [vmem:[%s117 + $0x1f8] sm:$0xff]
        %v202 = vld [vmem:[%s117 + $0x200] sm:$0xff]
        %v203 = vld [vmem:[%s117 + $0x208] sm:$0xff]
        %v204 = vld [vmem:[%s117 + $0x210] sm:$0xff]
        %v205 = vld [vmem:[%s117 + $0x218] sm:$0xff]
        %v206 = vld [vmem:[%s117 + $0x220] sm:$0xff]
        %v207 = vld [vmem:[%s117 + $0x228] sm:$0xff]
        %v208 = vld [vmem:[%s117 + $0x230] sm:$0xff]
        %v209 = vld [vmem:[%s117 + $0x238] sm:$0xff]
        %v210 = vld [vmem:[%s117 + $0x240] sm:$0xff]
        %v211 = vld [vmem:[%s117 + $0x248] sm:$0xff]
        %v212 = vld [vmem:[%s117 + $0x250] sm:$0xff]
        %v213 = vld [vmem:[%s117 + $0x258] sm:$0xff]
        %v214 = vld [vmem:[%s117 + $0x260] sm:$0xff]
        %v215 = vld [vmem:[%s117 + $0x268] sm:$0xff]
        %v216 = vld [vmem:[%s117 + $0x270] sm:$0xff]
        %v217 = vld [vmem:[%s117 + $0x278] sm:$0xff]
        %v218 = vld [vmem:[%s117 + $0x280] sm:$0xff]
        %v219 = vld [vmem:[%s117 + $0x288] sm:$0xff]
        %v220 = vld [vmem:[%s117 + $0x290] sm:$0xff]
        %v221 = vld [vmem:[%s117 + $0x298] sm:$0xff]
        %v222 = vld [vmem:[%s117 + $0x2a0] sm:$0xff]
        %v223 = vld [vmem:[%s117 + $0x2a8] sm:$0xff]
        %v224 = vld [vmem:[%s117 + $0x2b0] sm:$0xff]
        %v225 = vld [vmem:[%s117 + $0x2b8] sm:$0xff]
        %v226 = vld [vmem:[%s117 + $0x2c0] sm:$0xff]
        %v227 = vld [vmem:[%s117 + $0x2c8] sm:$0xff]
        %v228 = vld [vmem:[%s117 + $0x2d0] sm:$0xff]
        %v229 = vld [vmem:[%s117 + $0x2d8] sm:$0xff]
        %v230 = vld [vmem:[%s117 + $0x2e0] sm:$0xff]
        %v231 = vld [vmem:[%s117 + $0x2e8] sm:$0xff]
        %v232 = vld [vmem:[%s117 + $0x2f0] sm:$0xff]
        %v233 = vld [vmem:[%s117 + $0x2f8] sm:$0xff]
        %v234 = vld [vmem:[%s117 + $0x300] sm:$0xff]
        %v235 = vld [vmem:[%s117 + $0x308] sm:$0xff]
        %v236 = vld [vmem:[%s117 + $0x310] sm:$0xff]
        %v237 = vld [vmem:[%s117 + $0x318] sm:$0xff]
        %v238 = vld [vmem:[%s117 + $0x320] sm:$0xff]
        %v239 = vld [vmem:[%s117 + $0x328] sm:$0xff]
        %v240 = vld [vmem:[%s117 + $0x330] sm:$0xff]
        %v241 = vld [vmem:[%s117 + $0x338] sm:$0xff]
        %v242 = vld [vmem:[%s117 + $0x340] sm:$0xff]
        %v243 = vld [vmem:[%s117 + $0x348] sm:$0xff]
        %v244 = vld [vmem:[%s117 + $0x350] sm:$0xff]
        %v245 = vld [vmem:[%s117 + $0x358] sm:$0xff]
        %v246 = vld [vmem:[%s117 + $0x360] sm:$0xff]
        %v247 = vld [vmem:[%s117 + $0x368] sm:$0xff]
        %v248 = vld [vmem:[%s117 + $0x370] sm:$0xff]
        %v249 = vld [vmem:[%s117 + $0x378] sm:$0xff]
        %v250 = vld [vmem:[%s117 + $0x380] sm:$0xff]
        %v251 = vld [vmem:[%s117 + $0x388] sm:$0xff]
        %v252 = vld [vmem:[%s117 + $0x390] sm:$0xff]
        %v253 = vld [vmem:[%s117 + $0x398] sm:$0xff]
        %v254 = vld [vmem:[%s117 + $0x3a0] sm:$0xff]
        %v255 = vld [vmem:[%s117 + $0x3a8] sm:$0xff]
        %v256 = vld [vmem:[%s117 + $0x3b0] sm:$0xff]
        %v257 = vld [vmem:[%s117 + $0x3b8] sm:$0xff]
        %v258 = vld [vmem:[%s117 + $0x3c0] sm:$0xff]
        %v259 = vld [vmem:[%s117 + $0x3c8] sm:$0xff]
        %v260 = vld [vmem:[%s117 + $0x3d0] sm:$0xff]
        %v261 = vld [vmem:[%s117 + $0x3d8] sm:$0xff]
        %v262 = vld [vmem:[%s117 + $0x3e0] sm:$0xff]
        %v263 = vld [vmem:[%s117 + $0x3e8] sm:$0xff]
        %v264 = vld [vmem:[%s117 + $0x3f0] sm:$0xff]
        %v265 = vld [vmem:[%s117 + $0x3f8] sm:$0xff]
        %v266 = vmul.f32 %v138, %v138
        %v267 = vmul.f32 %v139, %v139
        %v268 = vmul.f32 %v140, %v140
        %v269 = vmul.f32 %v141, %v141
        %v270 = vmul.f32 %v142, %v142
        %v271 = vmul.f32 %v143, %v143
        %v272 = vmul.f32 %v144, %v144
        %v273 = vmul.f32 %v145, %v145
        %v274 = vmul.f32 %v146, %v146
        %v275 = vmul.f32 %v147, %v147
        %v276 = vmul.f32 %v148, %v148
        %v277 = vmul.f32 %v149, %v149
        %v278 = vmul.f32 %v150, %v150
        %v279 = vmul.f32 %v151, %v151
        %v280 = vmul.f32 %v152, %v152
        %v281 = vmul.f32 %v153, %v153
        %v282 = vmul.f32 %v154, %v154
        %v283 = vmul.f32 %v155, %v155
        %v284 = vmul.f32 %v156, %v156
        %v285 = vmul.f32 %v157, %v157
        %v286 = vmul.f32 %v158, %v158
        %v287 = vmul.f32 %v159, %v159
        %v288 = vmul.f32 %v160, %v160
        %v289 = vmul.f32 %v161, %v161
        %v290 = vmul.f32 %v162, %v162
        %v291 = vmul.f32 %v163, %v163
        %v292 = vmul.f32 %v164, %v164
        %v293 = vmul.f32 %v165, %v165
        %v294 = vmul.f32 %v166, %v166
        %v295 = vmul.f32 %v167, %v167
        %v296 = vmul.f32 %v168, %v168
        %v297 = vmul.f32 %v169, %v169
        %v298 = vmul.f32 %v170, %v170
        %v299 = vmul.f32 %v171, %v171
        %v300 = vmul.f32 %v172, %v172
        %v301 = vmul.f32 %v173, %v173
        %v302 = vmul.f32 %v174, %v174
        %v303 = vmul.f32 %v175, %v175
        %v304 = vmul.f32 %v176, %v176
        %v305 = vmul.f32 %v177, %v177
        %v306 = vmul.f32 %v178, %v178
        %v307 = vmul.f32 %v179, %v179
        %v308 = vmul.f32 %v180, %v180
        %v309 = vmul.f32 %v181, %v181
        %v310 = vmul.f32 %v182, %v182
        %v311 = vmul.f32 %v183, %v183
        %v312 = vmul.f32 %v184, %v184
        %v313 = vmul.f32 %v185, %v185
        %v314 = vmul.f32 %v186, %v186
        %v315 = vmul.f32 %v187, %v187
        %v316 = vmul.f32 %v188, %v188
        %v317 = vmul.f32 %v189, %v189
        %v318 = vmul.f32 %v190, %v190
        %v319 = vmul.f32 %v191, %v191
        %v320 = vmul.f32 %v192, %v192
        %v321 = vmul.f32 %v193, %v193
        %v322 = vmul.f32 %v194, %v194
        %v323 = vmul.f32 %v195, %v195
        %v324 = vmul.f32 %v196, %v196
        %v325 = vmul.f32 %v197, %v197
        %v326 = vmul.f32 %v198, %v198
        %v327 = vmul.f32 %v199, %v199
        %v328 = vmul.f32 %v200, %v200
        %v329 = vmul.f32 %v201, %v201
        %v330 = vmul.f32 %v202, %v202
        %v331 = vmul.f32 %v203, %v203
        %v332 = vmul.f32 %v204, %v204
        %v333 = vmul.f32 %v205, %v205
        %v334 = vmul.f32 %v206, %v206
        %v335 = vmul.f32 %v207, %v207
        %v336 = vmul.f32 %v208, %v208
        %v337 = vmul.f32 %v209, %v209
        %v338 = vmul.f32 %v210, %v210
        %v339 = vmul.f32 %v211, %v211
        %v340 = vmul.f32 %v212, %v212
        %v341 = vmul.f32 %v213, %v213
        %v342 = vmul.f32 %v214, %v214
        %v343 = vmul.f32 %v215, %v215
        %v344 = vmul.f32 %v216, %v216
        %v345 = vmul.f32 %v217, %v217
        %v346 = vmul.f32 %v218, %v218
        %v347 = vmul.f32 %v219, %v219
        %v348 = vmul.f32 %v220, %v220
        %v349 = vmul.f32 %v221, %v221
        %v350 = vmul.f32 %v222, %v222
        %v351 = vmul.f32 %v223, %v223
        %v352 = vmul.f32 %v224, %v224
        %v353 = vmul.f32 %v225, %v225
        %v354 = vmul.f32 %v226, %v226
        %v355 = vmul.f32 %v227, %v227
        %v356 = vmul.f32 %v228, %v228
        %v357 = vmul.f32 %v229, %v229
        %v358 = vmul.f32 %v230, %v230
        %v359 = vmul.f32 %v231, %v231
        %v360 = vmul.f32 %v232, %v232
        %v361 = vmul.f32 %v233, %v233
        %v362 = vmul.f32 %v234, %v234
        %v363 = vmul.f32 %v235, %v235
        %v364 = vmul.f32 %v236, %v236
        %v365 = vmul.f32 %v237, %v237
        %v366 = vmul.f32 %v238, %v238
        %v367 = vmul.f32 %v239, %v239
        %v368 = vmul.f32 %v240, %v240
        %v369 = vmul.f32 %v241, %v241
        %v370 = vmul.f32 %v242, %v242
        %v371 = vmul.f32 %v243, %v243
        %v372 = vmul.f32 %v244, %v244
        %v373 = vmul.f32 %v245, %v245
        %v374 = vmul.f32 %v246, %v246
        %v375 = vmul.f32 %v247, %v247
        %v376 = vmul.f32 %v248, %v248
        %v377 = vmul.f32 %v249, %v249
        %v378 = vmul.f32 %v250, %v250
        %v379 = vmul.f32 %v251, %v251
        %v380 = vmul.f32 %v252, %v252
        %v381 = vmul.f32 %v253, %v253
        %v382 = vmul.f32 %v254, %v254
        %v383 = vmul.f32 %v255, %v255
        %v384 = vmul.f32 %v256, %v256
        %v385 = vmul.f32 %v257, %v257
        %v386 = vmul.f32 %v258, %v258
        %v387 = vmul.f32 %v259, %v259
        %v388 = vmul.f32 %v260, %v260
        %v389 = vmul.f32 %v261, %v261
        %v390 = vmul.f32 %v262, %v262
        %v391 = vmul.f32 %v263, %v263
        %v392 = vmul.f32 %v264, %v264
        %v393 = vmul.f32 %v265, %v265
        %v394 = vmul.f32 %v138, %v266
        %v395 = vmul.f32 %v139, %v267
        %v396 = vmul.f32 %v140, %v268
        %v397 = vmul.f32 %v141, %v269
        %v398 = vmul.f32 %v142, %v270
        %v399 = vmul.f32 %v143, %v271
        %v400 = vmul.f32 %v144, %v272
        %v401 = vmul.f32 %v145, %v273
        %v402 = vmul.f32 %v146, %v274
        %v403 = vmul.f32 %v147, %v275
        %v404 = vmul.f32 %v148, %v276
        %v405 = vmul.f32 %v149, %v277
        %v406 = vmul.f32 %v150, %v278
        %v407 = vmul.f32 %v151, %v279
        %v408 = vmul.f32 %v152, %v280
        %v409 = vmul.f32 %v153, %v281
        %v410 = vmul.f32 %v154, %v282
        %v411 = vmul.f32 %v155, %v283
        %v412 = vmul.f32 %v156, %v284
        %v413 = vmul.f32 %v157, %v285
        %v414 = vmul.f32 %v158, %v286
        %v415 = vmul.f32 %v159, %v287
        %v416 = vmul.f32 %v160, %v288
        %v417 = vmul.f32 %v161, %v289
        %v418 = vmul.f32 %v162, %v290
        %v419 = vmul.f32 %v163, %v291
        %v420 = vmul.f32 %v164, %v292
        %v421 = vmul.f32 %v165, %v293
        %v422 = vmul.f32 %v166, %v294
        %v423 = vmul.f32 %v167, %v295
        %v424 = vmul.f32 %v168, %v296
        %v425 = vmul.f32 %v169, %v297
        %v426 = vmul.f32 %v170, %v298
        %v427 = vmul.f32 %v171, %v299
        %v428 = vmul.f32 %v172, %v300
        %v429 = vmul.f32 %v173, %v301
        %v430 = vmul.f32 %v174, %v302
        %v431 = vmul.f32 %v175, %v303
        %v432 = vmul.f32 %v176, %v304
        %v433 = vmul.f32 %v177, %v305
        %v434 = vmul.f32 %v178, %v306
        %v435 = vmul.f32 %v179, %v307
        %v436 = vmul.f32 %v180, %v308
        %v437 = vmul.f32 %v181, %v309
        %v438 = vmul.f32 %v182, %v310
        %v439 = vmul.f32 %v183, %v311
        %v440 = vmul.f32 %v184, %v312
        %v441 = vmul.f32 %v185, %v313
        %v442 = vmul.f32 %v186, %v314
        %v443 = vmul.f32 %v187, %v315
        %v444 = vmul.f32 %v188, %v316
        %v445 = vmul.f32 %v189, %v317
        %v446 = vmul.f32 %v190, %v318
        %v447 = vmul.f32 %v191, %v319
        %v448 = vmul.f32 %v192, %v320
        %v449 = vmul.f32 %v193, %v321
        %v450 = vmul.f32 %v194, %v322
        %v451 = vmul.f32 %v195, %v323
        %v452 = vmul.f32 %v196, %v324
        %v453 = vmul.f32 %v197, %v325
        %v454 = vmul.f32 %v198, %v326
        %v455 = vmul.f32 %v199, %v327
        %v456 = vmul.f32 %v200, %v328
        %v457 = vmul.f32 %v201, %v329
        %v458 = vmul.f32 %v202, %v330
        %v459 = vmul.f32 %v203, %v331
        %v460 = vmul.f32 %v204, %v332
        %v461 = vmul.f32 %v205, %v333
        %v462 = vmul.f32 %v206, %v334
        %v463 = vmul.f32 %v207, %v335
        %v464 = vmul.f32 %v208, %v336
        %v465 = vmul.f32 %v209, %v337
        %v466 = vmul.f32 %v210, %v338
        %v467 = vmul.f32 %v211, %v339
        %v468 = vmul.f32 %v212, %v340
        %v469 = vmul.f32 %v213, %v341
        %v470 = vmul.f32 %v214, %v342
        %v471 = vmul.f32 %v215, %v343
        %v472 = vmul.f32 %v216, %v344
        %v473 = vmul.f32 %v217, %v345
        %v474 = vmul.f32 %v218, %v346
        %v475 = vmul.f32 %v219, %v347
        %v476 = vmul.f32 %v220, %v348
        %v477 = vmul.f32 %v221, %v349
        %v478 = vmul.f32 %v222, %v350
        %v479 = vmul.f32 %v223, %v351
        %v480 = vmul.f32 %v224, %v352
        %v481 = vmul.f32 %v225, %v353
        %v482 = vmul.f32 %v226, %v354
        %v483 = vmul.f32 %v227, %v355
        %v484 = vmul.f32 %v228, %v356
        %v485 = vmul.f32 %v229, %v357
        %v486 = vmul.f32 %v230, %v358
        %v487 = vmul.f32 %v231, %v359
        %v488 = vmul.f32 %v232, %v360
        %v489 = vmul.f32 %v233, %v361
        %v490 = vmul.f32 %v234, %v362
        %v491 = vmul.f32 %v235, %v363
        %v492 = vmul.f32 %v236, %v364
        %v493 = vmul.f32 %v237, %v365
        %v494 = vmul.f32 %v238, %v366
        %v495 = vmul.f32 %v239, %v367
        %v496 = vmul.f32 %v240, %v368
        %v497 = vmul.f32 %v241, %v369
        %v498 = vmul.f32 %v242, %v370
        %v499 = vmul.f32 %v243, %v371
        %v500 = vmul.f32 %v244, %v372
        %v501 = vmul.f32 %v245, %v373
        %v502 = vmul.f32 %v246, %v374
        %v503 = vmul.f32 %v247, %v375
        %v504 = vmul.f32 %v248, %v376
        %v505 = vmul.f32 %v249, %v377
        %v506 = vmul.f32 %v250, %v378
        %v507 = vmul.f32 %v251, %v379
        %v508 = vmul.f32 %v252, %v380
        %v509 = vmul.f32 %v253, %v381
        %v510 = vmul.f32 %v254, %v382
        %v511 = vmul.f32 %v255, %v383
        %v512 = vmul.f32 %v256, %v384
        %v513 = vmul.f32 %v257, %v385
        %v514 = vmul.f32 %v258, %v386
        %v515 = vmul.f32 %v259, %v387
        %v516 = vmul.f32 %v260, %v388
        %v517 = vmul.f32 %v261, %v389
        %v518 = vmul.f32 %v262, %v390
        %v519 = vmul.f32 %v263, %v391
        %v520 = vmul.f32 %v264, %v392
        %v521 = vmul.f32 %v265, %v393
        %v522 = vmul.f32 %v394, 0.044715
        %v523 = vmul.f32 %v395, 0.044715
        %v524 = vmul.f32 %v396, 0.044715
        %v525 = vmul.f32 %v397, 0.044715
        %v526 = vmul.f32 %v398, 0.044715
        %v527 = vmul.f32 %v399, 0.044715
        %v528 = vmul.f32 %v400, 0.044715
        %v529 = vmul.f32 %v401, 0.044715
        %v530 = vmul.f32 %v402, 0.044715
        %v531 = vmul.f32 %v403, 0.044715
        %v532 = vmul.f32 %v404, 0.044715
        %v533 = vmul.f32 %v405, 0.044715
        %v534 = vmul.f32 %v406, 0.044715
        %v535 = vmul.f32 %v407, 0.044715
        %v536 = vmul.f32 %v408, 0.044715
        %v537 = vmul.f32 %v409, 0.044715
        %v538 = vmul.f32 %v410, 0.044715
        %v539 = vmul.f32 %v411, 0.044715
        %v540 = vmul.f32 %v412, 0.044715
        %v541 = vmul.f32 %v413, 0.044715
        %v542 = vmul.f32 %v414, 0.044715
        %v543 = vmul.f32 %v415, 0.044715
        %v544 = vmul.f32 %v416, 0.044715
        %v545 = vmul.f32 %v417, 0.044715
        %v546 = vmul.f32 %v418, 0.044715
        %v547 = vmul.f32 %v419, 0.044715
        %v548 = vmul.f32 %v420, 0.044715
        %v549 = vmul.f32 %v421, 0.044715
        %v550 = vmul.f32 %v422, 0.044715
        %v551 = vmul.f32 %v423, 0.044715
        %v552 = vmul.f32 %v424, 0.044715
        %v553 = vmul.f32 %v425, 0.044715
        %v554 = vmul.f32 %v426, 0.044715
        %v555 = vmul.f32 %v427, 0.044715
        %v556 = vmul.f32 %v428, 0.044715
        %v557 = vmul.f32 %v429, 0.044715
        %v558 = vmul.f32 %v430, 0.044715
        %v559 = vmul.f32 %v431, 0.044715
        %v560 = vmul.f32 %v432, 0.044715
        %v561 = vmul.f32 %v433, 0.044715
        %v562 = vmul.f32 %v434, 0.044715
        %v563 = vmul.f32 %v435, 0.044715
        %v564 = vmul.f32 %v436, 0.044715
        %v565 = vmul.f32 %v437, 0.044715
        %v566 = vmul.f32 %v438, 0.044715
        %v567 = vmul.f32 %v439, 0.044715
        %v568 = vmul.f32 %v440, 0.044715
        %v569 = vmul.f32 %v441, 0.044715
        %v570 = vmul.f32 %v442, 0.044715
        %v571 = vmul.f32 %v443, 0.044715
        %v572 = vmul.f32 %v444, 0.044715
        %v573 = vmul.f32 %v445, 0.044715
        %v574 = vmul.f32 %v446, 0.044715
        %v575 = vmul.f32 %v447, 0.044715
        %v576 = vmul.f32 %v448, 0.044715
        %v577 = vmul.f32 %v449, 0.044715
        %v578 = vmul.f32 %v450, 0.044715
        %v579 = vmul.f32 %v451, 0.044715
        %v580 = vmul.f32 %v452, 0.044715
        %v581 = vmul.f32 %v453, 0.044715
        %v582 = vmul.f32 %v454, 0.044715
        %v583 = vmul.f32 %v455, 0.044715
        %v584 = vmul.f32 %v456, 0.044715
        %v585 = vmul.f32 %v457, 0.044715
        %v586 = vmul.f32 %v458, 0.044715
        %v587 = vmul.f32 %v459, 0.044715
        %v588 = vmul.f32 %v460, 0.044715
        %v589 = vmul.f32 %v461, 0.044715
        %v590 = vmul.f32 %v462, 0.044715
        %v591 = vmul.f32 %v463, 0.044715
        %v592 = vmul.f32 %v464, 0.044715
        %v593 = vmul.f32 %v465, 0.044715
        %v594 = vmul.f32 %v466, 0.044715
        %v595 = vmul.f32 %v467, 0.044715
        %v596 = vmul.f32 %v468, 0.044715
        %v597 = vmul.f32 %v469, 0.044715
        %v598 = vmul.f32 %v470, 0.044715
        %v599 = vmul.f32 %v471, 0.044715
        %v600 = vmul.f32 %v472, 0.044715
        %v601 = vmul.f32 %v473, 0.044715
        %v602 = vmul.f32 %v474, 0.044715
        %v603 = vmul.f32 %v475, 0.044715
        %v604 = vmul.f32 %v476, 0.044715
        %v605 = vmul.f32 %v477, 0.044715
        %v606 = vmul.f32 %v478, 0.044715
        %v607 = vmul.f32 %v479, 0.044715
        %v608 = vmul.f32 %v480, 0.044715
        %v609 = vmul.f32 %v481, 0.044715
        %v610 = vmul.f32 %v482, 0.044715
        %v611 = vmul.f32 %v483, 0.044715
        %v612 = vmul.f32 %v484, 0.044715
        %v613 = vmul.f32 %v485, 0.044715
        %v614 = vmul.f32 %v486, 0.044715
        %v615 = vmul.f32 %v487, 0.044715
        %v616 = vmul.f32 %v488, 0.044715
        %v617 = vmul.f32 %v489, 0.044715
        %v618 = vmul.f32 %v490, 0.044715
        %v619 = vmul.f32 %v491, 0.044715
        %v620 = vmul.f32 %v492, 0.044715
        %v621 = vmul.f32 %v493, 0.044715
        %v622 = vmul.f32 %v494, 0.044715
        %v623 = vmul.f32 %v495, 0.044715
        %v624 = vmul.f32 %v496, 0.044715
        %v625 = vmul.f32 %v497, 0.044715
        %v626 = vmul.f32 %v498, 0.044715
        %v627 = vmul.f32 %v499, 0.044715
        %v628 = vmul.f32 %v500, 0.044715
        %v629 = vmul.f32 %v501, 0.044715
        %v630 = vmul.f32 %v502, 0.044715
        %v631 = vmul.f32 %v503, 0.044715
        %v632 = vmul.f32 %v504, 0.044715
        %v633 = vmul.f32 %v505, 0.044715
        %v634 = vmul.f32 %v506, 0.044715
        %v635 = vmul.f32 %v507, 0.044715
        %v636 = vmul.f32 %v508, 0.044715
        %v637 = vmul.f32 %v509, 0.044715
        %v638 = vmul.f32 %v510, 0.044715
        %v639 = vmul.f32 %v511, 0.044715
        %v640 = vmul.f32 %v512, 0.044715
        %v641 = vmul.f32 %v513, 0.044715
        %v642 = vmul.f32 %v514, 0.044715
        %v643 = vmul.f32 %v515, 0.044715
        %v644 = vmul.f32 %v516, 0.044715
        %v645 = vmul.f32 %v517, 0.044715
        %v646 = vmul.f32 %v518, 0.044715
        %v647 = vmul.f32 %v519, 0.044715
        %v648 = vmul.f32 %v520, 0.044715
        %v649 = vmul.f32 %v521, 0.044715
        %v650 = vadd.f32 %v138, %v522
        %v651 = vadd.f32 %v139, %v523
        %v652 = vadd.f32 %v140, %v524
        %v653 = vadd.f32 %v141, %v525
        %v654 = vadd.f32 %v142, %v526
        %v655 = vadd.f32 %v143, %v527
        %v656 = vadd.f32 %v144, %v528
        %v657 = vadd.f32 %v145, %v529
        %v658 = vadd.f32 %v146, %v530
        %v659 = vadd.f32 %v147, %v531
        %v660 = vadd.f32 %v148, %v532
        %v661 = vadd.f32 %v149, %v533
        %v662 = vadd.f32 %v150, %v534
        %v663 = vadd.f32 %v151, %v535
        %v664 = vadd.f32 %v152, %v536
        %v665 = vadd.f32 %v153, %v537
        %v666 = vadd.f32 %v154, %v538
        %v667 = vadd.f32 %v155, %v539
        %v668 = vadd.f32 %v156, %v540
        %v669 = vadd.f32 %v157, %v541
        %v670 = vadd.f32 %v158, %v542
        %v671 = vadd.f32 %v159, %v543
        %v672 = vadd.f32 %v160, %v544
        %v673 = vadd.f32 %v161, %v545
        %v674 = vadd.f32 %v162, %v546
        %v675 = vadd.f32 %v163, %v547
        %v676 = vadd.f32 %v164, %v548
        %v677 = vadd.f32 %v165, %v549
        %v678 = vadd.f32 %v166, %v550
        %v679 = vadd.f32 %v167, %v551
        %v680 = vadd.f32 %v168, %v552
        %v681 = vadd.f32 %v169, %v553
        %v682 = vadd.f32 %v170, %v554
        %v683 = vadd.f32 %v171, %v555
        %v684 = vadd.f32 %v172, %v556
        %v685 = vadd.f32 %v173, %v557
        %v686 = vadd.f32 %v174, %v558
        %v687 = vadd.f32 %v175, %v559
        %v688 = vadd.f32 %v176, %v560
        %v689 = vadd.f32 %v177, %v561
        %v690 = vadd.f32 %v178, %v562
        %v691 = vadd.f32 %v179, %v563
        %v692 = vadd.f32 %v180, %v564
        %v693 = vadd.f32 %v181, %v565
        %v694 = vadd.f32 %v182, %v566
        %v695 = vadd.f32 %v183, %v567
        %v696 = vadd.f32 %v184, %v568
        %v697 = vadd.f32 %v185, %v569
        %v698 = vadd.f32 %v186, %v570
        %v699 = vadd.f32 %v187, %v571
        %v700 = vadd.f32 %v188, %v572
        %v701 = vadd.f32 %v189, %v573
        %v702 = vadd.f32 %v190, %v574
        %v703 = vadd.f32 %v191, %v575
        %v704 = vadd.f32 %v192, %v576
        %v705 = vadd.f32 %v193, %v577
        %v706 = vadd.f32 %v194, %v578
        %v707 = vadd.f32 %v195, %v579
        %v708 = vadd.f32 %v196, %v580
        %v709 = vadd.f32 %v197, %v581
        %v710 = vadd.f32 %v198, %v582
        %v711 = vadd.f32 %v199, %v583
        %v712 = vadd.f32 %v200, %v584
        %v713 = vadd.f32 %v201, %v585
        %v714 = vadd.f32 %v202, %v586
        %v715 = vadd.f32 %v203, %v587
        %v716 = vadd.f32 %v204, %v588
        %v717 = vadd.f32 %v205, %v589
        %v718 = vadd.f32 %v206, %v590
        %v719 = vadd.f32 %v207, %v591
        %v720 = vadd.f32 %v208, %v592
        %v721 = vadd.f32 %v209, %v593
        %v722 = vadd.f32 %v210, %v594
        %v723 = vadd.f32 %v211, %v595
        %v724 = vadd.f32 %v212, %v596
        %v725 = vadd.f32 %v213, %v597
        %v726 = vadd.f32 %v214, %v598
        %v727 = vadd.f32 %v215, %v599
        %v728 = vadd.f32 %v216, %v600
        %v729 = vadd.f32 %v217, %v601
        %v730 = vadd.f32 %v218, %v602
        %v731 = vadd.f32 %v219, %v603
        %v732 = vadd.f32 %v220, %v604
        %v733 = vadd.f32 %v221, %v605
        %v734 = vadd.f32 %v222, %v606
        %v735 = vadd.f32 %v223, %v607
        %v736 = vadd.f32 %v224, %v608
        %v737 = vadd.f32 %v225, %v609
        %v738 = vadd.f32 %v226, %v610
        %v739 = vadd.f32 %v227, %v611
        %v740 = vadd.f32 %v228, %v612
        %v741 = vadd.f32 %v229, %v613
        %v742 = vadd.f32 %v230, %v614
        %v743 = vadd.f32 %v231, %v615
        %v744 = vadd.f32 %v232, %v616
        %v745 = vadd.f32 %v233, %v617
        %v746 = vadd.f32 %v234, %v618
        %v747 = vadd.f32 %v235, %v619
        %v748 = vadd.f32 %v236, %v620
        %v749 = vadd.f32 %v237, %v621
        %v750 = vadd.f32 %v238, %v622
        %v751 = vadd.f32 %v239, %v623
        %v752 = vadd.f32 %v240, %v624
        %v753 = vadd.f32 %v241, %v625
        %v754 = vadd.f32 %v242, %v626
        %v755 = vadd.f32 %v243, %v627
        %v756 = vadd.f32 %v244, %v628
        %v757 = vadd.f32 %v245, %v629
        %v758 = vadd.f32 %v246, %v630
        %v759 = vadd.f32 %v247, %v631
        %v760 = vadd.f32 %v248, %v632
        %v761 = vadd.f32 %v249, %v633
        %v762 = vadd.f32 %v250, %v634
        %v763 = vadd.f32 %v251, %v635
        %v764 = vadd.f32 %v252, %v636
        %v765 = vadd.f32 %v253, %v637
        %v766 = vadd.f32 %v254, %v638
        %v767 = vadd.f32 %v255, %v639
        %v768 = vadd.f32 %v256, %v640
        %v769 = vadd.f32 %v257, %v641
        %v770 = vadd.f32 %v258, %v642
        %v771 = vadd.f32 %v259, %v643
        %v772 = vadd.f32 %v260, %v644
        %v773 = vadd.f32 %v261, %v645
        %v774 = vadd.f32 %v262, %v646
        %v775 = vadd.f32 %v263, %v647
        %v776 = vadd.f32 %v264, %v648
        %v777 = vadd.f32 %v265, %v649
        %v778 = vmul.f32 %v650, 0.7978846
        %v779 = vmul.f32 %v651, 0.7978846
        %v780 = vmul.f32 %v652, 0.7978846
        %v781 = vmul.f32 %v653, 0.7978846
        %v782 = vmul.f32 %v654, 0.7978846
        %v783 = vmul.f32 %v655, 0.7978846
        %v784 = vmul.f32 %v656, 0.7978846
        %v785 = vmul.f32 %v657, 0.7978846
        %v786 = vmul.f32 %v658, 0.7978846
        %v787 = vmul.f32 %v659, 0.7978846
        %v788 = vmul.f32 %v660, 0.7978846
        %v789 = vmul.f32 %v661, 0.7978846
        %v790 = vmul.f32 %v662, 0.7978846
        %v791 = vmul.f32 %v663, 0.7978846
        %v792 = vmul.f32 %v664, 0.7978846
        %v793 = vmul.f32 %v665, 0.7978846
        %v794 = vmul.f32 %v666, 0.7978846
        %v795 = vmul.f32 %v667, 0.7978846
        %v796 = vmul.f32 %v668, 0.7978846
        %v797 = vmul.f32 %v669, 0.7978846
        %v798 = vmul.f32 %v670, 0.7978846
        %v799 = vmul.f32 %v671, 0.7978846
        %v800 = vmul.f32 %v672, 0.7978846
        %v801 = vmul.f32 %v673, 0.7978846
        %v802 = vmul.f32 %v674, 0.7978846
        %v803 = vmul.f32 %v675, 0.7978846
        %v804 = vmul.f32 %v676, 0.7978846
        %v805 = vmul.f32 %v677, 0.7978846
        %v806 = vmul.f32 %v678, 0.7978846
        %v807 = vmul.f32 %v679, 0.7978846
        %v808 = vmul.f32 %v680, 0.7978846
        %v809 = vmul.f32 %v681, 0.7978846
        %v810 = vmul.f32 %v682, 0.7978846
        %v811 = vmul.f32 %v683, 0.7978846
        %v812 = vmul.f32 %v684, 0.7978846
        %v813 = vmul.f32 %v685, 0.7978846
        %v814 = vmul.f32 %v686, 0.7978846
        %v815 = vmul.f32 %v687, 0.7978846
        %v816 = vmul.f32 %v688, 0.7978846
        %v817 = vmul.f32 %v689, 0.7978846
        %v818 = vmul.f32 %v690, 0.7978846
        %v819 = vmul.f32 %v691, 0.7978846
        %v820 = vmul.f32 %v692, 0.7978846
        %v821 = vmul.f32 %v693, 0.7978846
        %v822 = vmul.f32 %v694, 0.7978846
        %v823 = vmul.f32 %v695, 0.7978846
        %v824 = vmul.f32 %v696, 0.7978846
        %v825 = vmul.f32 %v697, 0.7978846
        %v826 = vmul.f32 %v698, 0.7978846
        %v827 = vmul.f32 %v699, 0.7978846
        %v828 = vmul.f32 %v700, 0.7978846
        %v829 = vmul.f32 %v701, 0.7978846
        %v830 = vmul.f32 %v702, 0.7978846
        %v831 = vmul.f32 %v703, 0.7978846
        %v832 = vmul.f32 %v704, 0.7978846
        %v833 = vmul.f32 %v705, 0.7978846
        %v834 = vmul.f32 %v706, 0.7978846
        %v835 = vmul.f32 %v707, 0.7978846
        %v836 = vmul.f32 %v708, 0.7978846
        %v837 = vmul.f32 %v709, 0.7978846
        %v838 = vmul.f32 %v710, 0.7978846
        %v839 = vmul.f32 %v711, 0.7978846
        %v840 = vmul.f32 %v712, 0.7978846
        %v841 = vmul.f32 %v713, 0.7978846
        %v842 = vmul.f32 %v714, 0.7978846
        %v843 = vmul.f32 %v715, 0.7978846
        %v844 = vmul.f32 %v716, 0.7978846
        %v845 = vmul.f32 %v717, 0.7978846
        %v846 = vmul.f32 %v718, 0.7978846
        %v847 = vmul.f32 %v719, 0.7978846
        %v848 = vmul.f32 %v720, 0.7978846
        %v849 = vmul.f32 %v721, 0.7978846
        %v850 = vmul.f32 %v722, 0.7978846
        %v851 = vmul.f32 %v723, 0.7978846
        %v852 = vmul.f32 %v724, 0.7978846
        %v853 = vmul.f32 %v725, 0.7978846
        %v854 = vmul.f32 %v726, 0.7978846
        %v855 = vmul.f32 %v727, 0.7978846
        %v856 = vmul.f32 %v728, 0.7978846
        %v857 = vmul.f32 %v729, 0.7978846
        %v858 = vmul.f32 %v730, 0.7978846
        %v859 = vmul.f32 %v731, 0.7978846
        %v860 = vmul.f32 %v732, 0.7978846
        %v861 = vmul.f32 %v733, 0.7978846
        %v862 = vmul.f32 %v734, 0.7978846
        %v863 = vmul.f32 %v735, 0.7978846
        %v864 = vmul.f32 %v736, 0.7978846
        %v865 = vmul.f32 %v737, 0.7978846
        %v866 = vmul.f32 %v738, 0.7978846
        %v867 = vmul.f32 %v739, 0.7978846
        %v868 = vmul.f32 %v740, 0.7978846
        %v869 = vmul.f32 %v741, 0.7978846
        %v870 = vmul.f32 %v742, 0.7978846
        %v871 = vmul.f32 %v743, 0.7978846
        %v872 = vmul.f32 %v744, 0.7978846
        %v873 = vmul.f32 %v745, 0.7978846
        %v874 = vmul.f32 %v746, 0.7978846
        %v875 = vmul.f32 %v747, 0.7978846
        %v876 = vmul.f32 %v748, 0.7978846
        %v877 = vmul.f32 %v749, 0.7978846
        %v878 = vmul.f32 %v750, 0.7978846
        %v879 = vmul.f32 %v751, 0.7978846
        %v880 = vmul.f32 %v752, 0.7978846
        %v881 = vmul.f32 %v753, 0.7978846
        %v882 = vmul.f32 %v754, 0.7978846
        %v883 = vmul.f32 %v755, 0.7978846
        %v884 = vmul.f32 %v756, 0.7978846
        %v885 = vmul.f32 %v757, 0.7978846
        %v886 = vmul.f32 %v758, 0.7978846
        %v887 = vmul.f32 %v759, 0.7978846
        %v888 = vmul.f32 %v760, 0.7978846
        %v889 = vmul.f32 %v761, 0.7978846
        %v890 = vmul.f32 %v762, 0.7978846
        %v891 = vmul.f32 %v763, 0.7978846
        %v892 = vmul.f32 %v764, 0.7978846
        %v893 = vmul.f32 %v765, 0.7978846
        %v894 = vmul.f32 %v766, 0.7978846
        %v895 = vmul.f32 %v767, 0.7978846
        %v896 = vmul.f32 %v768, 0.7978846
        %v897 = vmul.f32 %v769, 0.7978846
        %v898 = vmul.f32 %v770, 0.7978846
        %v899 = vmul.f32 %v771, 0.7978846
        %v900 = vmul.f32 %v772, 0.7978846
        %v901 = vmul.f32 %v773, 0.7978846
        %v902 = vmul.f32 %v774, 0.7978846
        %v903 = vmul.f32 %v775, 0.7978846
        %v904 = vmul.f32 %v776, 0.7978846
        %v905 = vmul.f32 %v777, 0.7978846
        %v906 = vtanh.pop %v778
        %v907 = vtanh.pop %v779
        %v908 = vtanh.pop %v780
        %v909 = vtanh.pop %v781
        %v910 = vtanh.pop %v782
        %v911 = vtanh.pop %v783
        %v912 = vtanh.pop %v784
        %v913 = vtanh.pop %v785
        %v914 = vtanh.pop %v786
        %v915 = vtanh.pop %v787
        %v916 = vtanh.pop %v788
        %v917 = vtanh.pop %v789
        %v918 = vtanh.pop %v790
        %v919 = vtanh.pop %v791
        %v920 = vtanh.pop %v792
        %v921 = vtanh.pop %v793
        %v922 = vtanh.pop %v794
        %v923 = vtanh.pop %v795
        %v924 = vtanh.pop %v796
        %v925 = vtanh.pop %v797
        %v926 = vtanh.pop %v798
        %v927 = vtanh.pop %v799
        %v928 = vtanh.pop %v800
        %v929 = vtanh.pop %v801
        %v930 = vtanh.pop %v802
        %v931 = vtanh.pop %v803
        %v932 = vtanh.pop %v804
        %v933 = vtanh.pop %v805
        %v934 = vtanh.pop %v806
        %v935 = vtanh.pop %v807
        %v936 = vtanh.pop %v808
        %v937 = vtanh.pop %v809
        %v938 = vtanh.pop %v810
        %v939 = vtanh.pop %v811
        %v940 = vtanh.pop %v812
        %v941 = vtanh.pop %v813
        %v942 = vtanh.pop %v814
        %v943 = vtanh.pop %v815
        %v944 = vtanh.pop %v816
        %v945 = vtanh.pop %v817
        %v946 = vtanh.pop %v818
        %v947 = vtanh.pop %v819
        %v948 = vtanh.pop %v820
        %v949 = vtanh.pop %v821
        %v950 = vtanh.pop %v822
        %v951 = vtanh.pop %v823
        %v952 = vtanh.pop %v824
        %v953 = vtanh.pop %v825
        %v954 = vtanh.pop %v826
        %v955 = vtanh.pop %v827
        %v956 = vtanh.pop %v828
        %v957 = vtanh.pop %v829
        %v958 = vtanh.pop %v830
        %v959 = vtanh.pop %v831
        %v960 = vtanh.pop %v832
        %v961 = vtanh.pop %v833
        %v962 = vtanh.pop %v834
        %v963 = vtanh.pop %v835
        %v964 = vtanh.pop %v836
        %v965 = vtanh.pop %v837
        %v966 = vtanh.pop %v838
        %v967 = vtanh.pop %v839
        %v968 = vtanh.pop %v840
        %v969 = vtanh.pop %v841
        %v970 = vtanh.pop %v842
        %v971 = vtanh.pop %v843
        %v972 = vtanh.pop %v844
        %v973 = vtanh.pop %v845
        %v974 = vtanh.pop %v846
        %v975 = vtanh.pop %v847
        %v976 = vtanh.pop %v848
        %v977 = vtanh.pop %v849
        %v978 = vtanh.pop %v850
        %v979 = vtanh.pop %v851
        %v980 = vtanh.pop %v852
        %v981 = vtanh.pop %v853
        %v982 = vtanh.pop %v854
        %v983 = vtanh.pop %v855
        %v984 = vtanh.pop %v856
        %v985 = vtanh.pop %v857
        %v986 = vtanh.pop %v858
        %v987 = vtanh.pop %v859
        %v988 = vtanh.pop %v860
        %v989 = vtanh.pop %v861
        %v990 = vtanh.pop %v862
        %v991 = vtanh.pop %v863
        %v992 = vtanh.pop %v864
        %v993 = vtanh.pop %v865
        %v994 = vtanh.pop %v866
        %v995 = vtanh.pop %v867
        %v996 = vtanh.pop %v868
        %v997 = vtanh.pop %v869
        %v998 = vtanh.pop %v870
        %v999 = vtanh.pop %v871
        %v1000 = vtanh.pop %v872
        %v1001 = vtanh.pop %v873
        %v1002 = vtanh.pop %v874
        %v1003 = vtanh.pop %v875
        %v1004 = vtanh.pop %v876
        %v1005 = vtanh.pop %v877
        %v1006 = vtanh.pop %v878
        %v1007 = vtanh.pop %v879
        %v1008 = vtanh.pop %v880
        %v1009 = vtanh.pop %v881
        %v1010 = vtanh.pop %v882
        %v1011 = vtanh.pop %v883
        %v1012 = vtanh.pop %v884
        %v1013 = vtanh.pop %v885
        %v1014 = vtanh.pop %v886
        %v1015 = vtanh.pop %v887
        %v1016 = vtanh.pop %v888
        %v1017 = vtanh.pop %v889
        %v1018 = vtanh.pop %v890
        %v1019 = vtanh.pop %v891
        %v1020 = vtanh.pop %v892
        %v1021 = vtanh.pop %v893
        %v1022 = vtanh.pop %v894
        %v1023 = vtanh.pop %v895
        %v1024 = vtanh.pop %v896
        %v1025 = vtanh.pop %v897
        %v1026 = vtanh.pop %v898
        %v1027 = vtanh.pop %v899
        %v1028 = vtanh.pop %v900
        %v1029 = vtanh.pop %v901
        %v1030 = vtanh.pop %v902
        %v1031 = vtanh.pop %v903
        %v1032 = vtanh.pop %v904
        %v1033 = vtanh.pop %v905
        %v1034 = vadd.f32 %v906, 1.0
        %v1035 = vadd.f32 %v907, 1.0
        %v1036 = vadd.f32 %v908, 1.0
        %v1037 = vadd.f32 %v909, 1.0
        %v1038 = vadd.f32 %v910, 1.0
        %v1039 = vadd.f32 %v911, 1.0
        %v1040 = vadd.f32 %v912, 1.0
        %v1041 = vadd.f32 %v913, 1.0
        %v1042 = vadd.f32 %v914, 1.0
        %v1043 = vadd.f32 %v915, 1.0
        %v1044 = vadd.f32 %v916, 1.0
        %v1045 = vadd.f32 %v917, 1.0
        %v1046 = vadd.f32 %v918, 1.0
        %v1047 = vadd.f32 %v919, 1.0
        %v1048 = vadd.f32 %v920, 1.0
        %v1049 = vadd.f32 %v921, 1.0
        %v1050 = vadd.f32 %v922, 1.0
        %v1051 = vadd.f32 %v923, 1.0
        %v1052 = vadd.f32 %v924, 1.0
        %v1053 = vadd.f32 %v925, 1.0
        %v1054 = vadd.f32 %v926, 1.0
        %v1055 = vadd.f32 %v927, 1.0
        %v1056 = vadd.f32 %v928, 1.0
        %v1057 = vadd.f32 %v929, 1.0
        %v1058 = vadd.f32 %v930, 1.0
        %v1059 = vadd.f32 %v931, 1.0
        %v1060 = vadd.f32 %v932, 1.0
        %v1061 = vadd.f32 %v933, 1.0
        %v1062 = vadd.f32 %v934, 1.0
        %v1063 = vadd.f32 %v935, 1.0
        %v1064 = vadd.f32 %v936, 1.0
        %v1065 = vadd.f32 %v937, 1.0
        %v1066 = vadd.f32 %v938, 1.0
        %v1067 = vadd.f32 %v939, 1.0
        %v1068 = vadd.f32 %v940, 1.0
        %v1069 = vadd.f32 %v941, 1.0
        %v1070 = vadd.f32 %v942, 1.0
        %v1071 = vadd.f32 %v943, 1.0
        %v1072 = vadd.f32 %v944, 1.0
        %v1073 = vadd.f32 %v945, 1.0
        %v1074 = vadd.f32 %v946, 1.0
        %v1075 = vadd.f32 %v947, 1.0
        %v1076 = vadd.f32 %v948, 1.0
        %v1077 = vadd.f32 %v949, 1.0
        %v1078 = vadd.f32 %v950, 1.0
        %v1079 = vadd.f32 %v951, 1.0
        %v1080 = vadd.f32 %v952, 1.0
        %v1081 = vadd.f32 %v953, 1.0
        %v1082 = vadd.f32 %v954, 1.0
        %v1083 = vadd.f32 %v955, 1.0
        %v1084 = vadd.f32 %v956, 1.0
        %v1085 = vadd.f32 %v957, 1.0
        %v1086 = vadd.f32 %v958, 1.0
        %v1087 = vadd.f32 %v959, 1.0
        %v1088 = vadd.f32 %v960, 1.0
        %v1089 = vadd.f32 %v961, 1.0
        %v1090 = vadd.f32 %v962, 1.0
        %v1091 = vadd.f32 %v963, 1.0
        %v1092 = vadd.f32 %v964, 1.0
        %v1093 = vadd.f32 %v965, 1.0
        %v1094 = vadd.f32 %v966, 1.0
        %v1095 = vadd.f32 %v967, 1.0
        %v1096 = vadd.f32 %v968, 1.0
        %v1097 = vadd.f32 %v969, 1.0
        %v1098 = vadd.f32 %v970, 1.0
        %v1099 = vadd.f32 %v971, 1.0
        %v1100 = vadd.f32 %v972, 1.0
        %v1101 = vadd.f32 %v973, 1.0
        %v1102 = vadd.f32 %v974, 1.0
        %v1103 = vadd.f32 %v975, 1.0
        %v1104 = vadd.f32 %v976, 1.0
        %v1105 = vadd.f32 %v977, 1.0
        %v1106 = vadd.f32 %v978, 1.0
        %v1107 = vadd.f32 %v979, 1.0
        %v1108 = vadd.f32 %v980, 1.0
        %v1109 = vadd.f32 %v981, 1.0
        %v1110 = vadd.f32 %v982, 1.0
        %v1111 = vadd.f32 %v983, 1.0
        %v1112 = vadd.f32 %v984, 1.0
        %v1113 = vadd.f32 %v985, 1.0
        %v1114 = vadd.f32 %v986, 1.0
        %v1115 = vadd.f32 %v987, 1.0
        %v1116 = vadd.f32 %v988, 1.0
        %v1117 = vadd.f32 %v989, 1.0
        %v1118 = vadd.f32 %v990, 1.0
        %v1119 = vadd.f32 %v991, 1.0
        %v1120 = vadd.f32 %v992, 1.0
        %v1121 = vadd.f32 %v993, 1.0
        %v1122 = vadd.f32 %v994, 1.0
        %v1123 = vadd.f32 %v995, 1.0
        %v1124 = vadd.f32 %v996, 1.0
        %v1125 = vadd.f32 %v997, 1.0
        %v1126 = vadd.f32 %v998, 1.0
        %v1127 = vadd.f32 %v999, 1.0
        %v1128 = vadd.f32 %v1000, 1.0
        %v1129 = vadd.f32 %v1001, 1.0
        %v1130 = vadd.f32 %v1002, 1.0
        %v1131 = vadd.f32 %v1003, 1.0
        %v1132 = vadd.f32 %v1004, 1.0
        %v1133 = vadd.f32 %v1005, 1.0
        %v1134 = vadd.f32 %v1006, 1.0
        %v1135 = vadd.f32 %v1007, 1.0
        %v1136 = vadd.f32 %v1008, 1.0
        %v1137 = vadd.f32 %v1009, 1.0
        %v1138 = vadd.f32 %v1010, 1.0
        %v1139 = vadd.f32 %v1011, 1.0
        %v1140 = vadd.f32 %v1012, 1.0
        %v1141 = vadd.f32 %v1013, 1.0
        %v1142 = vadd.f32 %v1014, 1.0
        %v1143 = vadd.f32 %v1015, 1.0
        %v1144 = vadd.f32 %v1016, 1.0
        %v1145 = vadd.f32 %v1017, 1.0
        %v1146 = vadd.f32 %v1018, 1.0
        %v1147 = vadd.f32 %v1019, 1.0
        %v1148 = vadd.f32 %v1020, 1.0
        %v1149 = vadd.f32 %v1021, 1.0
        %v1150 = vadd.f32 %v1022, 1.0
        %v1151 = vadd.f32 %v1023, 1.0
        %v1152 = vadd.f32 %v1024, 1.0
        %v1153 = vadd.f32 %v1025, 1.0
        %v1154 = vadd.f32 %v1026, 1.0
        %v1155 = vadd.f32 %v1027, 1.0
        %v1156 = vadd.f32 %v1028, 1.0
        %v1157 = vadd.f32 %v1029, 1.0
        %v1158 = vadd.f32 %v1030, 1.0
        %v1159 = vadd.f32 %v1031, 1.0
        %v1160 = vadd.f32 %v1032, 1.0
        %v1161 = vadd.f32 %v1033, 1.0
        %v1162 = vmul.f32 %v1034, 0.5
        %v1163 = vmul.f32 %v1035, 0.5
        %v1164 = vmul.f32 %v1036, 0.5
        %v1165 = vmul.f32 %v1037, 0.5
        %v1166 = vmul.f32 %v1038, 0.5
        %v1167 = vmul.f32 %v1039, 0.5
        %v1168 = vmul.f32 %v1040, 0.5
        %v1169 = vmul.f32 %v1041, 0.5
        %v1170 = vmul.f32 %v1042, 0.5
        %v1171 = vmul.f32 %v1043, 0.5
        %v1172 = vmul.f32 %v1044, 0.5
        %v1173 = vmul.f32 %v1045, 0.5
        %v1174 = vmul.f32 %v1046, 0.5
        %v1175 = vmul.f32 %v1047, 0.5
        %v1176 = vmul.f32 %v1048, 0.5
        %v1177 = vmul.f32 %v1049, 0.5
        %v1178 = vmul.f32 %v1050, 0.5
        %v1179 = vmul.f32 %v1051, 0.5
        %v1180 = vmul.f32 %v1052, 0.5
        %v1181 = vmul.f32 %v1053, 0.5
        %v1182 = vmul.f32 %v1054, 0.5
        %v1183 = vmul.f32 %v1055, 0.5
        %v1184 = vmul.f32 %v1056, 0.5
        %v1185 = vmul.f32 %v1057, 0.5
        %v1186 = vmul.f32 %v1058, 0.5
        %v1187 = vmul.f32 %v1059, 0.5
        %v1188 = vmul.f32 %v1060, 0.5
        %v1189 = vmul.f32 %v1061, 0.5
        %v1190 = vmul.f32 %v1062, 0.5
        %v1191 = vmul.f32 %v1063, 0.5
        %v1192 = vmul.f32 %v1064, 0.5
        %v1193 = vmul.f32 %v1065, 0.5
        %v1194 = vmul.f32 %v1066, 0.5
        %v1195 = vmul.f32 %v1067, 0.5
        %v1196 = vmul.f32 %v1068, 0.5
        %v1197 = vmul.f32 %v1069, 0.5
        %v1198 = vmul.f32 %v1070, 0.5
        %v1199 = vmul.f32 %v1071, 0.5
        %v1200 = vmul.f32 %v1072, 0.5
        %v1201 = vmul.f32 %v1073, 0.5
        %v1202 = vmul.f32 %v1074, 0.5
        %v1203 = vmul.f32 %v1075, 0.5
        %v1204 = vmul.f32 %v1076, 0.5
        %v1205 = vmul.f32 %v1077, 0.5
        %v1206 = vmul.f32 %v1078, 0.5
        %v1207 = vmul.f32 %v1079, 0.5
        %v1208 = vmul.f32 %v1080, 0.5
        %v1209 = vmul.f32 %v1081, 0.5
        %v1210 = vmul.f32 %v1082, 0.5
        %v1211 = vmul.f32 %v1083, 0.5
        %v1212 = vmul.f32 %v1084, 0.5
        %v1213 = vmul.f32 %v1085, 0.5
        %v1214 = vmul.f32 %v1086, 0.5
        %v1215 = vmul.f32 %v1087, 0.5
        %v1216 = vmul.f32 %v1088, 0.5
        %v1217 = vmul.f32 %v1089, 0.5
        %v1218 = vmul.f32 %v1090, 0.5
        %v1219 = vmul.f32 %v1091, 0.5
        %v1220 = vmul.f32 %v1092, 0.5
        %v1221 = vmul.f32 %v1093, 0.5
        %v1222 = vmul.f32 %v1094, 0.5
        %v1223 = vmul.f32 %v1095, 0.5
        %v1224 = vmul.f32 %v1096, 0.5
        %v1225 = vmul.f32 %v1097, 0.5
        %v1226 = vmul.f32 %v1098, 0.5
        %v1227 = vmul.f32 %v1099, 0.5
        %v1228 = vmul.f32 %v1100, 0.5
        %v1229 = vmul.f32 %v1101, 0.5
        %v1230 = vmul.f32 %v1102, 0.5
        %v1231 = vmul.f32 %v1103, 0.5
        %v1232 = vmul.f32 %v1104, 0.5
        %v1233 = vmul.f32 %v1105, 0.5
        %v1234 = vmul.f32 %v1106, 0.5
        %v1235 = vmul.f32 %v1107, 0.5
        %v1236 = vmul.f32 %v1108, 0.5
        %v1237 = vmul.f32 %v1109, 0.5
        %v1238 = vmul.f32 %v1110, 0.5
        %v1239 = vmul.f32 %v1111, 0.5
        %v1240 = vmul.f32 %v1112, 0.5
        %v1241 = vmul.f32 %v1113, 0.5
        %v1242 = vmul.f32 %v1114, 0.5
        %v1243 = vmul.f32 %v1115, 0.5
        %v1244 = vmul.f32 %v1116, 0.5
        %v1245 = vmul.f32 %v1117, 0.5
        %v1246 = vmul.f32 %v1118, 0.5
        %v1247 = vmul.f32 %v1119, 0.5
        %v1248 = vmul.f32 %v1120, 0.5
        %v1249 = vmul.f32 %v1121, 0.5
        %v1250 = vmul.f32 %v1122, 0.5
        %v1251 = vmul.f32 %v1123, 0.5
        %v1252 = vmul.f32 %v1124, 0.5
        %v1253 = vmul.f32 %v1125, 0.5
        %v1254 = vmul.f32 %v1126, 0.5
        %v1255 = vmul.f32 %v1127, 0.5
        %v1256 = vmul.f32 %v1128, 0.5
        %v1257 = vmul.f32 %v1129, 0.5
        %v1258 = vmul.f32 %v1130, 0.5
        %v1259 = vmul.f32 %v1131, 0.5
        %v1260 = vmul.f32 %v1132, 0.5
        %v1261 = vmul.f32 %v1133, 0.5
        %v1262 = vmul.f32 %v1134, 0.5
        %v1263 = vmul.f32 %v1135, 0.5
        %v1264 = vmul.f32 %v1136, 0.5
        %v1265 = vmul.f32 %v1137, 0.5
        %v1266 = vmul.f32 %v1138, 0.5
        %v1267 = vmul.f32 %v1139, 0.5
        %v1268 = vmul.f32 %v1140, 0.5
        %v1269 = vmul.f32 %v1141, 0.5
        %v1270 = vmul.f32 %v1142, 0.5
        %v1271 = vmul.f32 %v1143, 0.5
        %v1272 = vmul.f32 %v1144, 0.5
        %v1273 = vmul.f32 %v1145, 0.5
        %v1274 = vmul.f32 %v1146, 0.5
        %v1275 = vmul.f32 %v1147, 0.5
        %v1276 = vmul.f32 %v1148, 0.5
        %v1277 = vmul.f32 %v1149, 0.5
        %v1278 = vmul.f32 %v1150, 0.5
        %v1279 = vmul.f32 %v1151, 0.5
        %v1280 = vmul.f32 %v1152, 0.5
        %v1281 = vmul.f32 %v1153, 0.5
        %v1282 = vmul.f32 %v1154, 0.5
        %v1283 = vmul.f32 %v1155, 0.5
        %v1284 = vmul.f32 %v1156, 0.5
        %v1285 = vmul.f32 %v1157, 0.5
        %v1286 = vmul.f32 %v1158, 0.5
        %v1287 = vmul.f32 %v1159, 0.5
        %v1288 = vmul.f32 %v1160, 0.5
        %v1289 = vmul.f32 %v1161, 0.5
        %v1290 = vmul.f32 %v138, %v1162
        %v1291 = vmul.f32 %v139, %v1163
        %v1292 = vmul.f32 %v140, %v1164
        %v1293 = vmul.f32 %v141, %v1165
        %v1294 = vmul.f32 %v142, %v1166
        %v1295 = vmul.f32 %v143, %v1167
        %v1296 = vmul.f32 %v144, %v1168
        %v1297 = vmul.f32 %v145, %v1169
        %v1298 = vmul.f32 %v146, %v1170
        %v1299 = vmul.f32 %v147, %v1171
        %v1300 = vmul.f32 %v148, %v1172
        %v1301 = vmul.f32 %v149, %v1173
        %v1302 = vmul.f32 %v150, %v1174
        %v1303 = vmul.f32 %v151, %v1175
        %v1304 = vmul.f32 %v152, %v1176
        %v1305 = vmul.f32 %v153, %v1177
        %v1306 = vmul.f32 %v154, %v1178
        %v1307 = vmul.f32 %v155, %v1179
        %v1308 = vmul.f32 %v156, %v1180
        %v1309 = vmul.f32 %v157, %v1181
        %v1310 = vmul.f32 %v158, %v1182
        %v1311 = vmul.f32 %v159, %v1183
        %v1312 = vmul.f32 %v160, %v1184
        %v1313 = vmul.f32 %v161, %v1185
        %v1314 = vmul.f32 %v162, %v1186
        %v1315 = vmul.f32 %v163, %v1187
        %v1316 = vmul.f32 %v164, %v1188
        %v1317 = vmul.f32 %v165, %v1189
        %v1318 = vmul.f32 %v166, %v1190
        %v1319 = vmul.f32 %v167, %v1191
        %v1320 = vmul.f32 %v168, %v1192
        %v1321 = vmul.f32 %v169, %v1193
        %v1322 = vmul.f32 %v170, %v1194
        %v1323 = vmul.f32 %v171, %v1195
        %v1324 = vmul.f32 %v172, %v1196
        %v1325 = vmul.f32 %v173, %v1197
        %v1326 = vmul.f32 %v174, %v1198
        %v1327 = vmul.f32 %v175, %v1199
        %v1328 = vmul.f32 %v176, %v1200
        %v1329 = vmul.f32 %v177, %v1201
        %v1330 = vmul.f32 %v178, %v1202
        %v1331 = vmul.f32 %v179, %v1203
        %v1332 = vmul.f32 %v180, %v1204
        %v1333 = vmul.f32 %v181, %v1205
        %v1334 = vmul.f32 %v182, %v1206
        %v1335 = vmul.f32 %v183, %v1207
        %v1336 = vmul.f32 %v184, %v1208
        %v1337 = vmul.f32 %v185, %v1209
        %v1338 = vmul.f32 %v186, %v1210
        %v1339 = vmul.f32 %v187, %v1211
        %v1340 = vmul.f32 %v188, %v1212
        %v1341 = vmul.f32 %v189, %v1213
        %v1342 = vmul.f32 %v190, %v1214
        %v1343 = vmul.f32 %v191, %v1215
        %v1344 = vmul.f32 %v192, %v1216
        %v1345 = vmul.f32 %v193, %v1217
        %v1346 = vmul.f32 %v194, %v1218
        %v1347 = vmul.f32 %v195, %v1219
        %v1348 = vmul.f32 %v196, %v1220
        %v1349 = vmul.f32 %v197, %v1221
        %v1350 = vmul.f32 %v198, %v1222
        %v1351 = vmul.f32 %v199, %v1223
        %v1352 = vmul.f32 %v200, %v1224
        %v1353 = vmul.f32 %v201, %v1225
        %v1354 = vmul.f32 %v202, %v1226
        %v1355 = vmul.f32 %v203, %v1227
        %v1356 = vmul.f32 %v204, %v1228
        %v1357 = vmul.f32 %v205, %v1229
        %v1358 = vmul.f32 %v206, %v1230
        %v1359 = vmul.f32 %v207, %v1231
        %v1360 = vmul.f32 %v208, %v1232
        %v1361 = vmul.f32 %v209, %v1233
        %v1362 = vmul.f32 %v210, %v1234
        %v1363 = vmul.f32 %v211, %v1235
        %v1364 = vmul.f32 %v212, %v1236
        %v1365 = vmul.f32 %v213, %v1237
        %v1366 = vmul.f32 %v214, %v1238
        %v1367 = vmul.f32 %v215, %v1239
        %v1368 = vmul.f32 %v216, %v1240
        %v1369 = vmul.f32 %v217, %v1241
        %v1370 = vmul.f32 %v218, %v1242
        %v1371 = vmul.f32 %v219, %v1243
        %v1372 = vmul.f32 %v220, %v1244
        %v1373 = vmul.f32 %v221, %v1245
        %v1374 = vmul.f32 %v222, %v1246
        %v1375 = vmul.f32 %v223, %v1247
        %v1376 = vmul.f32 %v224, %v1248
        %v1377 = vmul.f32 %v225, %v1249
        %v1378 = vmul.f32 %v226, %v1250
        %v1379 = vmul.f32 %v227, %v1251
        %v1380 = vmul.f32 %v228, %v1252
        %v1381 = vmul.f32 %v229, %v1253
        %v1382 = vmul.f32 %v230, %v1254
        %v1383 = vmul.f32 %v231, %v1255
        %v1384 = vmul.f32 %v232, %v1256
        %v1385 = vmul.f32 %v233, %v1257
        %v1386 = vmul.f32 %v234, %v1258
        %v1387 = vmul.f32 %v235, %v1259
        %v1388 = vmul.f32 %v236, %v1260
        %v1389 = vmul.f32 %v237, %v1261
        %v1390 = vmul.f32 %v238, %v1262
        %v1391 = vmul.f32 %v239, %v1263
        %v1392 = vmul.f32 %v240, %v1264
        %v1393 = vmul.f32 %v241, %v1265
        %v1394 = vmul.f32 %v242, %v1266
        %v1395 = vmul.f32 %v243, %v1267
        %v1396 = vmul.f32 %v244, %v1268
        %v1397 = vmul.f32 %v245, %v1269
        %v1398 = vmul.f32 %v246, %v1270
        %v1399 = vmul.f32 %v247, %v1271
        %v1400 = vmul.f32 %v248, %v1272
        %v1401 = vmul.f32 %v249, %v1273
        %v1402 = vmul.f32 %v250, %v1274
        %v1403 = vmul.f32 %v251, %v1275
        %v1404 = vmul.f32 %v252, %v1276
        %v1405 = vmul.f32 %v253, %v1277
        %v1406 = vmul.f32 %v254, %v1278
        %v1407 = vmul.f32 %v255, %v1279
        %v1408 = vmul.f32 %v256, %v1280
        %v1409 = vmul.f32 %v257, %v1281
        %v1410 = vmul.f32 %v258, %v1282
        %v1411 = vmul.f32 %v259, %v1283
        %v1412 = vmul.f32 %v260, %v1284
        %v1413 = vmul.f32 %v261, %v1285
        %v1414 = vmul.f32 %v262, %v1286
        %v1415 = vmul.f32 %v263, %v1287
        %v1416 = vmul.f32 %v264, %v1288
        %v1417 = vmul.f32 %v265, %v1289
        %v1418 = vadd.f32 %v1290, %v138
        %v1419 = vadd.f32 %v1291, %v139
        %v1420 = vadd.f32 %v1292, %v140
        %v1421 = vadd.f32 %v1293, %v141
        %v1422 = vadd.f32 %v1294, %v142
        %v1423 = vadd.f32 %v1295, %v143
        %v1424 = vadd.f32 %v1296, %v144
        %v1425 = vadd.f32 %v1297, %v145
        %v1426 = vadd.f32 %v1298, %v146
        %v1427 = vadd.f32 %v1299, %v147
        %v1428 = vadd.f32 %v1300, %v148
        %v1429 = vadd.f32 %v1301, %v149
        %v1430 = vadd.f32 %v1302, %v150
        %v1431 = vadd.f32 %v1303, %v151
        %v1432 = vadd.f32 %v1304, %v152
        %v1433 = vadd.f32 %v1305, %v153
        %v1434 = vadd.f32 %v1306, %v154
        %v1435 = vadd.f32 %v1307, %v155
        %v1436 = vadd.f32 %v1308, %v156
        %v1437 = vadd.f32 %v1309, %v157
        %v1438 = vadd.f32 %v1310, %v158
        %v1439 = vadd.f32 %v1311, %v159
        %v1440 = vadd.f32 %v1312, %v160
        %v1441 = vadd.f32 %v1313, %v161
        %v1442 = vadd.f32 %v1314, %v162
        %v1443 = vadd.f32 %v1315, %v163
        %v1444 = vadd.f32 %v1316, %v164
        %v1445 = vadd.f32 %v1317, %v165
        %v1446 = vadd.f32 %v1318, %v166
        %v1447 = vadd.f32 %v1319, %v167
        %v1448 = vadd.f32 %v1320, %v168
        %v1449 = vadd.f32 %v1321, %v169
        %v1450 = vadd.f32 %v1322, %v170
        %v1451 = vadd.f32 %v1323, %v171
        %v1452 = vadd.f32 %v1324, %v172
        %v1453 = vadd.f32 %v1325, %v173
        %v1454 = vadd.f32 %v1326, %v174
        %v1455 = vadd.f32 %v1327, %v175
        %v1456 = vadd.f32 %v1328, %v176
        %v1457 = vadd.f32 %v1329, %v177
        %v1458 = vadd.f32 %v1330, %v178
        %v1459 = vadd.f32 %v1331, %v179
        %v1460 = vadd.f32 %v1332, %v180
        %v1461 = vadd.f32 %v1333, %v181
        %v1462 = vadd.f32 %v1334, %v182
        %v1463 = vadd.f32 %v1335, %v183
        %v1464 = vadd.f32 %v1336, %v184
        %v1465 = vadd.f32 %v1337, %v185
        %v1466 = vadd.f32 %v1338, %v186
        %v1467 = vadd.f32 %v1339, %v187
        %v1468 = vadd.f32 %v1340, %v188
        %v1469 = vadd.f32 %v1341, %v189
        %v1470 = vadd.f32 %v1342, %v190
        %v1471 = vadd.f32 %v1343, %v191
        %v1472 = vadd.f32 %v1344, %v192
        %v1473 = vadd.f32 %v1345, %v193
        %v1474 = vadd.f32 %v1346, %v194
        %v1475 = vadd.f32 %v1347, %v195
        %v1476 = vadd.f32 %v1348, %v196
        %v1477 = vadd.f32 %v1349, %v197
        %v1478 = vadd.f32 %v1350, %v198
        %v1479 = vadd.f32 %v1351, %v199
        %v1480 = vadd.f32 %v1352, %v200
        %v1481 = vadd.f32 %v1353, %v201
        %v1482 = vadd.f32 %v1354, %v202
        %v1483 = vadd.f32 %v1355, %v203
        %v1484 = vadd.f32 %v1356, %v204
        %v1485 = vadd.f32 %v1357, %v205
        %v1486 = vadd.f32 %v1358, %v206
        %v1487 = vadd.f32 %v1359, %v207
        %v1488 = vadd.f32 %v1360, %v208
        %v1489 = vadd.f32 %v1361, %v209
        %v1490 = vadd.f32 %v1362, %v210
        %v1491 = vadd.f32 %v1363, %v211
        %v1492 = vadd.f32 %v1364, %v212
        %v1493 = vadd.f32 %v1365, %v213
        %v1494 = vadd.f32 %v1366, %v214
        %v1495 = vadd.f32 %v1367, %v215
        %v1496 = vadd.f32 %v1368, %v216
        %v1497 = vadd.f32 %v1369, %v217
        %v1498 = vadd.f32 %v1370, %v218
        %v1499 = vadd.f32 %v1371, %v219
        %v1500 = vadd.f32 %v1372, %v220
        %v1501 = vadd.f32 %v1373, %v221
        %v1502 = vadd.f32 %v1374, %v222
        %v1503 = vadd.f32 %v1375, %v223
        %v1504 = vadd.f32 %v1376, %v224
        %v1505 = vadd.f32 %v1377, %v225
        %v1506 = vadd.f32 %v1378, %v226
        %v1507 = vadd.f32 %v1379, %v227
        %v1508 = vadd.f32 %v1380, %v228
        %v1509 = vadd.f32 %v1381, %v229
        %v1510 = vadd.f32 %v1382, %v230
        %v1511 = vadd.f32 %v1383, %v231
        %v1512 = vadd.f32 %v1384, %v232
        %v1513 = vadd.f32 %v1385, %v233
        %v1514 = vadd.f32 %v1386, %v234
        %v1515 = vadd.f32 %v1387, %v235
        %v1516 = vadd.f32 %v1388, %v236
        %v1517 = vadd.f32 %v1389, %v237
        %v1518 = vadd.f32 %v1390, %v238
        %v1519 = vadd.f32 %v1391, %v239
        %v1520 = vadd.f32 %v1392, %v240
        %v1521 = vadd.f32 %v1393, %v241
        %v1522 = vadd.f32 %v1394, %v242
        %v1523 = vadd.f32 %v1395, %v243
        %v1524 = vadd.f32 %v1396, %v244
        %v1525 = vadd.f32 %v1397, %v245
        %v1526 = vadd.f32 %v1398, %v246
        %v1527 = vadd.f32 %v1399, %v247
        %v1528 = vadd.f32 %v1400, %v248
        %v1529 = vadd.f32 %v1401, %v249
        %v1530 = vadd.f32 %v1402, %v250
        %v1531 = vadd.f32 %v1403, %v251
        %v1532 = vadd.f32 %v1404, %v252
        %v1533 = vadd.f32 %v1405, %v253
        %v1534 = vadd.f32 %v1406, %v254
        %v1535 = vadd.f32 %v1407, %v255
        %v1536 = vadd.f32 %v1408, %v256
        %v1537 = vadd.f32 %v1409, %v257
        %v1538 = vadd.f32 %v1410, %v258
        %v1539 = vadd.f32 %v1411, %v259
        %v1540 = vadd.f32 %v1412, %v260
        %v1541 = vadd.f32 %v1413, %v261
        %v1542 = vadd.f32 %v1414, %v262
        %v1543 = vadd.f32 %v1415, %v263
        %v1544 = vadd.f32 %v1416, %v264
        %v1545 = vadd.f32 %v1417, %v265
        %1546 = vst [vmem:[%s135] sm:$0xff] %v1418
        %1547 = vst [vmem:[%s135 + $0x8] sm:$0xff] %v1419
        %1548 = vst [vmem:[%s135 + $0x10] sm:$0xff] %v1420
        %1549 = vst [vmem:[%s135 + $0x18] sm:$0xff] %v1421
        %1550 = vst [vmem:[%s135 + $0x20] sm:$0xff] %v1422
        %1551 = vst [vmem:[%s135 + $0x28] sm:$0xff] %v1423
        %1552 = vst [vmem:[%s135 + $0x30] sm:$0xff] %v1424
        %1553 = vst [vmem:[%s135 + $0x38] sm:$0xff] %v1425
        %1554 = vst [vmem:[%s135 + $0x40] sm:$0xff] %v1426
        %1555 = vst [vmem:[%s135 + $0x48] sm:$0xff] %v1427
        %1556 = vst [vmem:[%s135 + $0x50] sm:$0xff] %v1428
        %1557 = vst [vmem:[%s135 + $0x58] sm:$0xff] %v1429
        %1558 = vst [vmem:[%s135 + $0x60] sm:$0xff] %v1430
        %1559 = vst [vmem:[%s135 + $0x68] sm:$0xff] %v1431
        %1560 = vst [vmem:[%s135 + $0x70] sm:$0xff] %v1432
        %1561 = vst [vmem:[%s135 + $0x78] sm:$0xff] %v1433
        %1562 = vst [vmem:[%s135 + $0x80] sm:$0xff] %v1434
        %1563 = vst [vmem:[%s135 + $0x88] sm:$0xff] %v1435
        %1564 = vst [vmem:[%s135 + $0x90] sm:$0xff] %v1436
        %1565 = vst [vmem:[%s135 + $0x98] sm:$0xff] %v1437
        %1566 = vst [vmem:[%s135 + $0xa0] sm:$0xff] %v1438
        %1567 = vst [vmem:[%s135 + $0xa8] sm:$0xff] %v1439
        %1568 = vst [vmem:[%s135 + $0xb0] sm:$0xff] %v1440
        %1569 = vst [vmem:[%s135 + $0xb8] sm:$0xff] %v1441
        %1570 = vst [vmem:[%s135 + $0xc0] sm:$0xff] %v1442
        %1571 = vst [vmem:[%s135 + $0xc8] sm:$0xff] %v1443
        %1572 = vst [vmem:[%s135 + $0xd0] sm:$0xff] %v1444
        %1573 = vst [vmem:[%s135 + $0xd8] sm:$0xff] %v1445
        %1574 = vst [vmem:[%s135 + $0xe0] sm:$0xff] %v1446
        %1575 = vst [vmem:[%s135 + $0xe8] sm:$0xff] %v1447
        %1576 = vst [vmem:[%s135 + $0xf0] sm:$0xff] %v1448
        %1577 = vst [vmem:[%s135 + $0xf8] sm:$0xff] %v1449
        %1578 = vst [vmem:[%s135 + $0x100] sm:$0xff] %v1450
        %1579 = vst [vmem:[%s135 + $0x108] sm:$0xff] %v1451
        %1580 = vst [vmem:[%s135 + $0x110] sm:$0xff] %v1452
        %1581 = vst [vmem:[%s135 + $0x118] sm:$0xff] %v1453
        %1582 = vst [vmem:[%s135 + $0x120] sm:$0xff] %v1454
        %1583 = vst [vmem:[%s135 + $0x128] sm:$0xff] %v1455
        %1584 = vst [vmem:[%s135 + $0x130] sm:$0xff] %v1456
        %1585 = vst [vmem:[%s135 + $0x138] sm:$0xff] %v1457
        %1586 = vst [vmem:[%s135 + $0x140] sm:$0xff] %v1458
        %1587 = vst [vmem:[%s135 + $0x148] sm:$0xff] %v1459
        %1588 = vst [vmem:[%s135 + $0x150] sm:$0xff] %v1460
        %1589 = vst [vmem:[%s135 + $0x158] sm:$0xff] %v1461
        %1590 = vst [vmem:[%s135 + $0x160] sm:$0xff] %v1462
        %1591 = vst [vmem:[%s135 + $0x168] sm:$0xff] %v1463
        %1592 = vst [vmem:[%s135 + $0x170] sm:$0xff] %v1464
        %1593 = vst [vmem:[%s135 + $0x178] sm:$0xff] %v1465
        %1594 = vst [vmem:[%s135 + $0x180] sm:$0xff] %v1466
        %1595 = vst [vmem:[%s135 + $0x188] sm:$0xff] %v1467
        %1596 = vst [vmem:[%s135 + $0x190] sm:$0xff] %v1468
        %1597 = vst [vmem:[%s135 + $0x198] sm:$0xff] %v1469
        %1598 = vst [vmem:[%s135 + $0x1a0] sm:$0xff] %v1470
        %1599 = vst [vmem:[%s135 + $0x1a8] sm:$0xff] %v1471
        %1600 = vst [vmem:[%s135 + $0x1b0] sm:$0xff] %v1472
        %1601 = vst [vmem:[%s135 + $0x1b8] sm:$0xff] %v1473
        %1602 = vst [vmem:[%s135 + $0x1c0] sm:$0xff] %v1474
        %1603 = vst [vmem:[%s135 + $0x1c8] sm:$0xff] %v1475
        %1604 = vst [vmem:[%s135 + $0x1d0] sm:$0xff] %v1476
        %1605 = vst [vmem:[%s135 + $0x1d8] sm:$0xff] %v1477
        %1606 = vst [vmem:[%s135 + $0x1e0] sm:$0xff] %v1478
        %1607 = vst [vmem:[%s135 + $0x1e8] sm:$0xff] %v1479
        %1608 = vst [vmem:[%s135 + $0x1f0] sm:$0xff] %v1480
        %1609 = vst [vmem:[%s135 + $0x1f8] sm:$0xff] %v1481
        %1610 = vst [vmem:[%s135 + $0x200] sm:$0xff] %v1482
        %1611 = vst [vmem:[%s135 + $0x208] sm:$0xff] %v1483
        %1612 = vst [vmem:[%s135 + $0x210] sm:$0xff] %v1484
        %1613 = vst [vmem:[%s135 + $0x218] sm:$0xff] %v1485
        %1614 = vst [vmem:[%s135 + $0x220] sm:$0xff] %v1486
        %1615 = vst [vmem:[%s135 + $0x228] sm:$0xff] %v1487
        %1616 = vst [vmem:[%s135 + $0x230] sm:$0xff] %v1488
        %1617 = vst [vmem:[%s135 + $0x238] sm:$0xff] %v1489
        %1618 = vst [vmem:[%s135 + $0x240] sm:$0xff] %v1490
        %1619 = vst [vmem:[%s135 + $0x248] sm:$0xff] %v1491
        %1620 = vst [vmem:[%s135 + $0x250] sm:$0xff] %v1492
        %1621 = vst [vmem:[%s135 + $0x258] sm:$0xff] %v1493
        %1622 = vst [vmem:[%s135 + $0x260] sm:$0xff] %v1494
        %1623 = vst [vmem:[%s135 + $0x268] sm:$0xff] %v1495
        %1624 = vst [vmem:[%s135 + $0x270] sm:$0xff] %v1496
        %1625 = vst [vmem:[%s135 + $0x278] sm:$0xff] %v1497
        %1626 = vst [vmem:[%s135 + $0x280] sm:$0xff] %v1498
        %1627 = vst [vmem:[%s135 + $0x288] sm:$0xff] %v1499
        %1628 = vst [vmem:[%s135 + $0x290] sm:$0xff] %v1500
        %1629 = vst [vmem:[%s135 + $0x298] sm:$0xff] %v1501
        %1630 = vst [vmem:[%s135 + $0x2a0] sm:$0xff] %v1502
        %1631 = vst [vmem:[%s135 + $0x2a8] sm:$0xff] %v1503
        %1632 = vst [vmem:[%s135 + $0x2b0] sm:$0xff] %v1504
        %1633 = vst [vmem:[%s135 + $0x2b8] sm:$0xff] %v1505
        %1634 = vst [vmem:[%s135 + $0x2c0] sm:$0xff] %v1506
        %1635 = vst [vmem:[%s135 + $0x2c8] sm:$0xff] %v1507
        %1636 = vst [vmem:[%s135 + $0x2d0] sm:$0xff] %v1508
        %1637 = vst [vmem:[%s135 + $0x2d8] sm:$0xff] %v1509
        %1638 = vst [vmem:[%s135 + $0x2e0] sm:$0xff] %v1510
        %1639 = vst [vmem:[%s135 + $0x2e8] sm:$0xff] %v1511
        %1640 = vst [vmem:[%s135 + $0x2f0] sm:$0xff] %v1512
        %1641 = vst [vmem:[%s135 + $0x2f8] sm:$0xff] %v1513
        %1642 = vst [vmem:[%s135 + $0x300] sm:$0xff] %v1514
        %1643 = vst [vmem:[%s135 + $0x308] sm:$0xff] %v1515
        %1644 = vst [vmem:[%s135 + $0x310] sm:$0xff] %v1516
        %1645 = vst [vmem:[%s135 + $0x318] sm:$0xff] %v1517
        %1646 = vst [vmem:[%s135 + $0x320] sm:$0xff] %v1518
        %1647 = vst [vmem:[%s135 + $0x328] sm:$0xff] %v1519
        %1648 = vst [vmem:[%s135 + $0x330] sm:$0xff] %v1520
        %1649 = vst [vmem:[%s135 + $0x338] sm:$0xff] %v1521
        %1650 = vst [vmem:[%s135 + $0x340] sm:$0xff] %v1522
        %1651 = vst [vmem:[%s135 + $0x348] sm:$0xff] %v1523
        %1652 = vst [vmem:[%s135 + $0x350] sm:$0xff] %v1524
        %1653 = vst [vmem:[%s135 + $0x358] sm:$0xff] %v1525
        %1654 = vst [vmem:[%s135 + $0x360] sm:$0xff] %v1526
        %1655 = vst [vmem:[%s135 + $0x368] sm:$0xff] %v1527
        %1656 = vst [vmem:[%s135 + $0x370] sm:$0xff] %v1528
        %1657 = vst [vmem:[%s135 + $0x378] sm:$0xff] %v1529
        %1658 = vst [vmem:[%s135 + $0x380] sm:$0xff] %v1530
        %1659 = vst [vmem:[%s135 + $0x388] sm:$0xff] %v1531
        %1660 = vst [vmem:[%s135 + $0x390] sm:$0xff] %v1532
        %1661 = vst [vmem:[%s135 + $0x398] sm:$0xff] %v1533
        %1662 = vst [vmem:[%s135 + $0x3a0] sm:$0xff] %v1534
        %1663 = vst [vmem:[%s135 + $0x3a8] sm:$0xff] %v1535
        %1664 = vst [vmem:[%s135 + $0x3b0] sm:$0xff] %v1536
        %1665 = vst [vmem:[%s135 + $0x3b8] sm:$0xff] %v1537
        %1666 = vst [vmem:[%s135 + $0x3c0] sm:$0xff] %v1538
        %1667 = vst [vmem:[%s135 + $0x3c8] sm:$0xff] %v1539
        %1668 = vst [vmem:[%s135 + $0x3d0] sm:$0xff] %v1540
        %1669 = vst [vmem:[%s135 + $0x3d8] sm:$0xff] %v1541
        %1670 = vst [vmem:[%s135 + $0x3e0] sm:$0xff] %v1542
        %1671 = vst [vmem:[%s135 + $0x3e8] sm:$0xff] %v1543
        %1672 = vst [vmem:[%s135 + $0x3f0] sm:$0xff] %v1544
        %1673 = vst [vmem:[%s135 + $0x3f8] sm:$0xff] %v1545
        %s1674 = sand.u32 %s52, 1
        %s1675 = scalar_lea.sflag [#allocation4], %s1674
        %s1676 = sand.u32 %s52, 1
        %s1677 = smul.addr %s1676, 1024
        %s1678 = scalar_lea.vmem [#allocation5], %s1677
        // Predicated region
        $region29: #{tpu_custom_call.1} parent=23 // pred_check
          %p1679 = pneg %p62
        $region30: #{tpu_custom_call.1} parent=23 // pred_check_branch
          %1681 = sbr.rel (%p1679) target = $region32
        $region31: #{tpu_custom_call.1} parent=23 // pred_region
          %s1682 = smul.u32 8, %s18
          %s1684 = ssub.s32 16384, 16384
          %1685 = vsyncadd %s1675, %s1684
          %s1686 = smul.addr %s1682, 16
          %s1687 = smul.addr %s1686, 128
          %s1688 = scalar_lea.hbm %s1, %s1687
          %s1689 = sshll.u32 %s1678, 4
          %s1690 = int_to_ptr.vmem [resolvable:$true] %s1689
          %1695 = dma.vmem_to_hbm [thread:$0]  %s1690, 16384, %s1688, %s1675, 2048, 2048, 128
        $region32: #{tpu_custom_call.1} parent=23 // pred_fallthru
          _
      $region24: #{tpu_custom_call.1} parent=5 // pred_fallthru
        _
      %p1696 = scmp.le.s32.totalorder 2, %s13
      // Predicated region
      $region33: #{tpu_custom_call.1} parent=5 // pred_check
        %p1697 = pneg %p1696
      $region34: #{tpu_custom_call.1} parent=5 // pred_check_branch
        %1699 = sbr.rel (%p1697) target = $region36
      $region35: #{tpu_custom_call.1} parent=5 // pred_region
        %s1700 = ssub.s32 %s13, 2
        // Predicated region
        $region37: #{tpu_custom_call.1} parent=35 // pred_check
          %p1701 = pneg %p68
        $region38: #{tpu_custom_call.1} parent=35 // pred_check_branch
          %1703 = sbr.rel (%p1701) target = $region40
        $region39: #{tpu_custom_call.1} parent=35 // pred_region
          %s1704 = sand.u32 %s53, 1
          %s1705 = scalar_lea.sflag [#allocation4], %s1704
          %s1706 = sand.u32 %s53, 1
          %s1707 = smul.addr %s1706, 1024
          %s1708 = scalar_lea.vmem [#allocation5], %s1707
          %1709 = dma.done %s1705, 16384
        $region40: #{tpu_custom_call.1} parent=35 // pred_fallthru
          _
      $region36: #{tpu_custom_call.1} parent=5 // pred_fallthru
        _
    $region6: #{tpu_custom_call.1} parent=1 // loop_footer
      %s17 = sadd.s32 1, %s13
    $region7: #{tpu_custom_call.1} parent=1 // loop_footer_branch
      %12 = sbr.rel target = $region3
    $region8: #{tpu_custom_call.1} parent=1 // loop_exit
      _
    %1710 = vsyncpa [#allocation3], 1
    %s1711 = scalar_lea.sflag [#allocation3], 1
    %1712 = vsyncpa %s1711, 1
    %1713 = vsyncpa [#allocation4], 1
    %s1714 = scalar_lea.sflag [#allocation4], 1
    %1715 = vsyncpa %s1714, 1

</llo_original>
